<compile_context>
chip_gen: v5e
topology: v5e:2x2
jax: 0.10.0
libtpu: 0.0.40
codegen_flags: <defaults>
</compile_context>

<pallas_src>
import jax
import jax.numpy as jnp
from jax import lax
from jax.experimental import pallas as pl
from jax.experimental.pallas import tpu as pltpu


def _round_up(x, m):
    return ((x + m - 1) // m) * m


def _make_gru_kernel(Tt, Bb, E, Hp, T_valid, T_pad):
    """Kernel closure over static tile sizes. Gate order [r, z, n] (PyTorch)."""
    need_mask = (T_pad != T_valid)  # only mask h-updates if T was padded to a multiple of Tt

    def kernel(x_ref, wih_ref, whh_ref, bias_ref, bhhn_ref, h0_ref,
               out_ref, hT_ref, gx_ref, h_ref):
        t_chunk = pl.program_id(1)

        # Initialize the carried hidden state at the first time-chunk of each batch block.
        @pl.when(t_chunk == 0)
        def _():
            h_ref[...] = h0_ref[...]

        # Input projection for the whole chunk: one MXU matmul (bf16 in, f32 accumulate).
        # bias already contains b_ih + b_hh for r/z and b_ih for n (lane-padded layout).
        x2 = x_ref[...].reshape(Tt * Bb, E)
        gx_ref[...] = (jnp.dot(x2, wih_ref[...], preferred_element_type=jnp.float32)
                       + bias_ref[...])

        whh = whh_ref[...]                                   # (Hp, 3Hp) bf16, hoisted
        bhh_n = jnp.broadcast_to(bhhn_ref[...], (Bb, Hp))    # broadcast hoisted out of the loop

        def step(t, h):
            row = pl.multiple_of(t * Bb, Bb)
            gx = gx_ref[pl.ds(row, Bb), :]                   # (Bb, 3Hp) f32
            gh = jnp.dot(h.astype(whh.dtype), whh,
                         preferred_element_type=jnp.float32)  # (Bb, 3Hp) f32
            # Gate math in f32 (safe on v5e: no bf16 VPU/EUP requirement).
            r = jax.nn.sigmoid(gx[:, 0 * Hp:1 * Hp] + gh[:, 0 * Hp:1 * Hp])
            z = jax.nn.sigmoid(gx[:, 1 * Hp:2 * Hp] + gh[:, 1 * Hp:2 * Hp])
            n = jnp.tanh(gx[:, 2 * Hp:3 * Hp] + r * (gh[:, 2 * Hp:3 * Hp] + bhh_n))
            h_new = (1.0 - z) * n + z * h
            out_ref[t] = h_new                               # lane-dense (Bb, Hp) store
            if need_mask:
                # Do not advance h on padded timesteps (beyond the real sequence length).
                h_new = jnp.where(t_chunk * Tt + t < T_valid, h_new, h)
            return h_new

        h_final = lax.fori_loop(0, Tt, step, h_ref[...], unroll=True)
        h_ref[...] = h_final
        hT_ref[...] = h_final

    return kernel


def encoder_gru_forward(ids, h0, emb, w_ih, w_hh, b_ih, b_hh, *,
                        t_chunk=8, batch_block=None):
    """ids: (B, T) int; h0: (1, B, H) f32. Returns ((B, T, H), (1, B, H)) like nn.GRU."""
    B, T = ids.shape
    V, E = emb.shape
    H = w_hh.shape[0]

    Hp = _round_up(H, 128)                                  # lane-padded hidden size
    Bb = batch_block if batch_block is not None else min(_round_up(B, 8), 128)
    Bb = _round_up(Bb, 8)
    Bp = _round_up(B, Bb)
    Tt = max(1, min(t_chunk, T))
    Tp = _round_up(T, Tt)

    # ---- Embedding lookup as a gather in the wrapper (O(B*T*E) bytes, no wasted FLOPs) ----
    x = jnp.take(emb, ids.astype(jnp.int32), axis=0)        # (B, T, E) f32
    x_tm = jnp.zeros((Tp, Bp, E), jnp.bfloat16)
    x_tm = x_tm.at[:T, :B].set(jnp.swapaxes(x, 0, 1).astype(jnp.bfloat16))  # time-major

    # ---- Lane-pad weights: gate g occupies columns [g*Hp, g*Hp + H), rest zero ----
    def pad_gates(w, rows):
        out = jnp.zeros((rows, 3 * Hp), jnp.float32)
        for g in range(3):
            out = out.at[:w.shape[0], g * Hp:g * Hp + H].set(w[:, g * H:(g + 1) * H])
        return out

    w_ih_p = pad_gates(w_ih, E).astype(jnp.bfloat16)        # (E, 3Hp) bf16
    w_hh_p = pad_gates(w_hh, Hp).astype(jnp.bfloat16)       # (Hp, 3Hp) bf16

    # Fold b_ih + b_hh into the input projection for r/z; b_hh_n stays inside r*(.) per GRU.
    bias = jnp.zeros((1, 3 * Hp), jnp.float32)
    bias = bias.at[:, 0 * Hp:0 * Hp + H].set(b_ih[:, 0 * H:1 * H] + b_hh[:, 0 * H:1 * H])
    bias = bias.at[:, 1 * Hp:1 * Hp + H].set(b_ih[:, 1 * H:2 * H] + b_hh[:, 1 * H:2 * H])
    bias = bias.at[:, 2 * Hp:2 * Hp + H].set(b_ih[:, 2 * H:3 * H])
    bhh_n = jnp.zeros((1, Hp), jnp.float32).at[:, :H].set(b_hh[:, 2 * H:3 * H])

    h0_p = jnp.zeros((Bp, Hp), jnp.float32).at[:B, :H].set(h0[0].astype(jnp.float32))

    n_b = Bp // Bb
    n_t = Tp // Tt
    kernel = _make_gru_kernel(Tt, Bb, E, Hp, T, Tp)

    # Explicit VMEM budget from the tile sizes (with 2x margin for double-buffering), capped
    # so the same config ports to v7x's 64 MiB VMEM.
    est = (2 * Tt * Bb * E * 2                 # x chunk (bf16), double-buffered
           + 2 * Tt * Bb * Hp * 4              # out chunk (f32), double-buffered
           + E * 3 * Hp * 2 + Hp * 3 * Hp * 2  # weights (bf16)
           + Tt * Bb * 3 * Hp * 4              # gx scratch
           + 4 * Bb * Hp * 4                   # h scratch, h0, hT
           + 8 * Hp * 4)                       # biases
    vmem_limit = int(min(max(2 * est, 4 * 1024 * 1024), 64 * 1024 * 1024))

    out_p, hT_p = pl.pallas_call(
        kernel,
        out_shape=(jax.ShapeDtypeStruct((Tp, Bp, Hp), jnp.float32),
                   jax.ShapeDtypeStruct((Bp, Hp), jnp.float32)),
        grid_spec=pltpu.PrefetchScalarGridSpec(
            num_scalar_prefetch=0,
            grid=(n_b, n_t),
            in_specs=[
                pl.BlockSpec((Tt, Bb, E), lambda b, t: (t, b, 0)),      # x chunk (streamed)
                pl.BlockSpec((E, 3 * Hp), lambda b, t: (0, 0)),          # W_ih (resident)
                pl.BlockSpec((Hp, 3 * Hp), lambda b, t: (0, 0)),         # W_hh (resident)
                pl.BlockSpec((1, 3 * Hp), lambda b, t: (0, 0)),          # fused bias
                pl.BlockSpec((1, Hp), lambda b, t: (0, 0)),              # b_hh_n
                pl.BlockSpec((Bb, Hp), lambda b, t: (b, 0)),             # h0 block
            ],
            out_specs=(
                pl.BlockSpec((Tt, Bb, Hp), lambda b, t: (t, b, 0)),      # out chunk (streamed)
                pl.BlockSpec((Bb, Hp), lambda b, t: (b, 0)),             # final hidden
            ),
            scratch_shapes=[
                pltpu.VMEM((Tt * Bb, 3 * Hp), jnp.float32),              # gx for current chunk
                pltpu.VMEM((Bb, Hp), jnp.float32),                       # carried hidden state
            ]),
        compiler_params=pltpu.CompilerParams(
            dimension_semantics=("parallel", "arbitrary"),               # batch || , time seq
            vmem_limit_bytes=vmem_limit),
    )(x_tm, w_ih_p, w_hh_p, bias, bhh_n, h0_p)

    out = out_p[:T, :B, :H].transpose(1, 0, 2)    # (B, T, H), batch_first like nn.GRU
    hidden = hT_p[:B, :H][None]                   # (1, B, H)
    return out, hidden


def encoder_gru_reference(ids, h0, emb, w_ih, w_hh, b_ih, b_hh):
    """Pure-JAX f32 reference matching PyTorch nn.Embedding + nn.GRU(batch_first=True)."""
    H = w_hh.shape[0]
    x = emb[ids]                                   # (B, T, E)

    def step(h, xt):
        gx = xt @ w_ih + b_ih[0]
        gh = h @ w_hh + b_hh[0]
        r = jax.nn.sigmoid(gx[:, :H] + gh[:, :H])
        z = jax.nn.sigmoid(gx[:, H:2 * H] + gh[:, H:2 * H])
        n = jnp.tanh(gx[:, 2 * H:] + r * gh[:, 2 * H:])
        h_new = (1.0 - z) * n + z * h
        return h_new, h_new

    hT, outs = lax.scan(step, h0[0], jnp.swapaxes(x, 0, 1))
    return jnp.swapaxes(outs, 0, 1), hT[None]


def init_params(key, vocab_size, embed_size, hidden_size):
    k1, k2, k3, k4, k5 = jax.random.split(key, 5)
    scale = 1.0 / float(hidden_size) ** 0.5
    emb = jax.random.normal(k1, (vocab_size, embed_size), jnp.float32)
    w_ih = jax.random.uniform(k2, (embed_size, 3 * hidden_size), jnp.float32, -scale, scale)
    w_hh = jax.random.uniform(k3, (hidden_size, 3 * hidden_size), jnp.float32, -scale, scale)
    b_ih = jax.random.uniform(k4, (1, 3 * hidden_size), jnp.float32, -scale, scale)
    b_hh = jax.random.uniform(k5, (1, 3 * hidden_size), jnp.float32, -scale, scale)
    return emb, w_ih, w_hh, b_ih, b_hh


if __name__ == "__main__":
    VOCAB, EMBED, HIDDEN = 50, 32, 32
    BATCH, SEQ = 2, 8

    key = jax.random.PRNGKey(0)
    kp, ki = jax.random.split(key)
    emb, w_ih, w_hh, b_ih, b_hh = init_params(kp, VOCAB, EMBED, HIDDEN)

    ids = jax.random.randint(ki, (BATCH, SEQ), 0, VOCAB, dtype=jnp.int32)
    hidden0 = jnp.zeros((1, BATCH, HIDDEN), jnp.float32)   # inithidden(), broadcast to batch

    fwd = jax.jit(encoder_gru_forward, static_argnames=("t_chunk", "batch_block"))
    out, hidden = fwd(ids, hidden0, emb, w_ih, w_hh, b_ih, b_hh)
    out, hidden = jax.block_until_ready((out, hidden))

    ref_out, ref_hidden = encoder_gru_reference(ids, hidden0, emb, w_ih, w_hh, b_ih, b_hh)
    assert out.shape == (BATCH, SEQ, HIDDEN)
    assert hidden.shape == (1, BATCH, HIDDEN)
    # bf16 MXU inputs (f32 accumulate) -> slightly looser tolerance vs the pure-f32 reference.
    assert jnp.allclose(out, ref_out, atol=3e-2, rtol=3e-2)
    assert jnp.allclose(hidden, ref_hidden, atol=3e-2, rtol=3e-2)

    print("KERNEL_OK")
</pallas_src>

<mosaic_0001>
module attributes {stable_mosaic.version = 11 : i64} {
  func.func @kernel(%arg0: i32, %arg1: i32, %arg2: memref<8x8x32xbf16, #tpu.memory_space<vmem>>, %arg3: memref<32x384xbf16, #tpu.memory_space<vmem>>, %arg4: memref<128x384xbf16, #tpu.memory_space<vmem>>, %arg5: memref<1x384xf32, #tpu.memory_space<vmem>>, %arg6: memref<1x128xf32, #tpu.memory_space<vmem>>, %arg7: memref<8x128xf32, #tpu.memory_space<vmem>>, %arg8: memref<8x8x128xf32, #tpu.memory_space<vmem>>, %arg9: memref<8x128xf32, #tpu.memory_space<vmem>>, %arg10: memref<64x384xf32, #tpu.memory_space<vmem>>, %arg11: memref<8x128xf32, #tpu.memory_space<vmem>>) attributes {dimension_semantics = [#tpu.dimension_semantics<parallel>, #tpu.dimension_semantics<arbitrary>], iteration_bounds = array<i64: 1, 1>, scalar_prefetch = 0 : i64, scratch_operands = 2 : i64, tpu.core_type = #tpu.core_type<tc>, window_params = [{transform_indices = @transform_0, window_bounds = array<i64: 8, 8, 32>}, {pipeline_mode = #tpu.pipeline_mode<synchronous>, transform_indices = @transform_1, window_bounds = array<i64: 32, 384>}, {pipeline_mode = #tpu.pipeline_mode<synchronous>, transform_indices = @transform_2, window_bounds = array<i64: 128, 384>}, {pipeline_mode = #tpu.pipeline_mode<synchronous>, transform_indices = @transform_3, window_bounds = array<i64: 1, 384>}, {pipeline_mode = #tpu.pipeline_mode<synchronous>, transform_indices = @transform_4, window_bounds = array<i64: 1, 128>}, {transform_indices = @transform_5, window_bounds = array<i64: 8, 128>}, {transform_indices = @transform_6, window_bounds = array<i64: 8, 8, 128>}, {transform_indices = @transform_7, window_bounds = array<i64: 8, 128>}]} {
    %c0_i32 = arith.constant 0 : i32
    %0 = arith.cmpi eq, %arg1, %c0_i32 : i32
    %1 = arith.extui %0 : i1 to i32
    %c0_i32_0 = arith.constant 0 : i32
    %2 = arith.cmpi ne, %1, %c0_i32_0 : i32
    scf.if %2 {
      %c0_84 = arith.constant 0 : index
      %c0_85 = arith.constant 0 : index
      %314 = vector.load %arg7[%c0_84, %c0_85] : memref<8x128xf32, #tpu.memory_space<vmem>>, vector<8x128xf32>
      %c0_86 = arith.constant 0 : index
      %c0_87 = arith.constant 0 : index
      %315 = vector.load %arg11[%c0_86, %c0_87] : memref<8x128xf32, #tpu.memory_space<vmem>>, vector<8x128xf32>
      tpu.vector_store %arg11[%c0_86, %c0_87], %314 {strides = array<i32>} : memref<8x128xf32, #tpu.memory_space<vmem>>, vector<8x128xf32>,
    } else {
    }
    %c0 = arith.constant 0 : index
    %c0_1 = arith.constant 0 : index
    %c0_2 = arith.constant 0 : index
    %3 = vector.load %arg2[%c0, %c0_1, %c0_2] : memref<8x8x32xbf16, #tpu.memory_space<vmem>>, vector<8x8x32xbf16>
    %4 = vector.shape_cast %3 : vector<8x8x32xbf16> to vector<64x32xbf16>
    %c0_3 = arith.constant 0 : index
    %c0_4 = arith.constant 0 : index
    %5 = vector.load %arg3[%c0_3, %c0_4] : memref<32x384xbf16, #tpu.memory_space<vmem>>, vector<32x384xbf16>
    %cst = arith.constant dense<0.000000e+00> : vector<64x384xf32>
    %6 = tpu.matmul %4, %5, %cst {dimension_numbers = #tpu.dot_dimension_numbers<[1], [0], [0], [1], [0, 0, 1, 1], [], []>} : vector<64x32xbf16>, vector<32x384xbf16>, vector<64x384xf32> -> vector<64x384xf32>
    %c0_5 = arith.constant 0 : index
    %c0_6 = arith.constant 0 : index
    %7 = vector.load %arg5[%c0_5, %c0_6] : memref<1x384xf32, #tpu.memory_space<vmem>>, vector<1x384xf32>
    %8 = vector.broadcast %7 : vector<1x384xf32> to vector<64x384xf32>
    %9 = arith.addf %6, %8 : vector<64x384xf32>
    %c0_7 = arith.constant 0 : index
    %c0_8 = arith.constant 0 : index
    %10 = vector.load %arg10[%c0_7, %c0_8] : memref<64x384xf32, #tpu.memory_space<vmem>>, vector<64x384xf32>
    tpu.vector_store %arg10[%c0_7, %c0_8], %9 {strides = array<i32>} : memref<64x384xf32, #tpu.memory_space<vmem>>, vector<64x384xf32>,
    %c0_9 = arith.constant 0 : index
    %c0_10 = arith.constant 0 : index
    %11 = vector.load %arg4[%c0_9, %c0_10] : memref<128x384xbf16, #tpu.memory_space<vmem>>, vector<128x384xbf16>
    %c0_11 = arith.constant 0 : index
    %c0_12 = arith.constant 0 : index
    %12 = vector.load %arg6[%c0_11, %c0_12] : memref<1x128xf32, #tpu.memory_space<vmem>>, vector<1x128xf32>
    %13 = vector.shape_cast %12 : vector<1x128xf32> to vector<1x128xf32>
    %14 = vector.broadcast %13 : vector<1x128xf32> to vector<8x128xf32>
    %c0_13 = arith.constant 0 : index
    %c0_14 = arith.constant 0 : index
    %15 = vector.load %arg11[%c0_13, %c0_14] : memref<8x128xf32, #tpu.memory_space<vmem>>, vector<8x128xf32>
    %c0_i32_15 = arith.constant 0 : i32
    %c8_i32 = arith.constant 8 : i32
    %16 = arith.muli %c0_i32_15, %c8_i32 : i32
    %17 = tpu.assume_multiple %16, 8 : i32
    %18 = arith.index_cast %17 : i32 to index
    %c0_16 = arith.constant 0 : index
    %19 = vector.load %arg10[%18, %c0_16] : memref<64x384xf32, #tpu.memory_space<vmem>>, vector<8x384xf32>
    %20 = arith.truncf %15 : vector<8x128xf32> to vector<8x128xbf16>
    %cst_17 = arith.constant dense<0.000000e+00> : vector<8x384xf32>
    %21 = tpu.matmul %20, %11, %cst_17 {dimension_numbers = #tpu.dot_dimension_numbers<[1], [0], [0], [1], [0, 0, 1, 1], [], []>} : vector<8x128xbf16>, vector<128x384xbf16>, vector<8x384xf32> -> vector<8x384xf32>
    %22 = vector.extract_strided_slice %19 {offsets = [0, 0], sizes = [8, 128], strides = [1, 1]} : vector<8x384xf32> to vector<8x128xf32>
    %23 = vector.extract_strided_slice %21 {offsets = [0, 0], sizes = [8, 128], strides = [1, 1]} : vector<8x384xf32> to vector<8x128xf32>
    %24 = arith.addf %22, %23 : vector<8x128xf32>
    %25 = arith.negf %24 : vector<8x128xf32>
    %26 = math.exp %25 : vector<8x128xf32>
    %cst_18 = arith.constant 1.000000e+00 : f32
    %27 = vector.broadcast %cst_18 : f32 to vector<8x128xf32>
    %28 = arith.addf %27, %26 : vector<8x128xf32>
    %29 = arith.divf %27, %28 : vector<8x128xf32>
    %30 = vector.extract_strided_slice %19 {offsets = [0, 128], sizes = [8, 128], strides = [1, 1]} : vector<8x384xf32> to vector<8x128xf32>
    %31 = vector.extract_strided_slice %21 {offsets = [0, 128], sizes = [8, 128], strides = [1, 1]} : vector<8x384xf32> to vector<8x128xf32>
    %32 = arith.addf %30, %31 : vector<8x128xf32>
    %33 = arith.negf %32 : vector<8x128xf32>
    %34 = math.exp %33 : vector<8x128xf32>
    %cst_19 = arith.constant 1.000000e+00 : f32
    %35 = vector.broadcast %cst_19 : f32 to vector<8x128xf32>
    %36 = arith.addf %35, %34 : vector<8x128xf32>
    %37 = arith.divf %35, %36 : vector<8x128xf32>
    %38 = vector.extract_strided_slice %19 {offsets = [0, 256], sizes = [8, 128], strides = [1, 1]} : vector<8x384xf32> to vector<8x128xf32>
    %39 = vector.extract_strided_slice %21 {offsets = [0, 256], sizes = [8, 128], strides = [1, 1]} : vector<8x384xf32> to vector<8x128xf32>
    %40 = arith.addf %39, %14 : vector<8x128xf32>
    %41 = arith.mulf %29, %40 : vector<8x128xf32>
    %42 = arith.addf %38, %41 : vector<8x128xf32>
    %43 = math.tanh %42 : vector<8x128xf32>
    %cst_20 = arith.constant 1.000000e+00 : f32
    %44 = vector.broadcast %cst_20 : f32 to vector<8x128xf32>
    %45 = arith.subf %44, %37 : vector<8x128xf32>
    %46 = arith.mulf %45, %43 : vector<8x128xf32>
    %47 = arith.mulf %37, %15 : vector<8x128xf32>
    %48 = arith.addf %46, %47 : vector<8x128xf32>
    %49 = arith.index_cast %c0_i32_15 : i32 to index
    %c0_21 = arith.constant 0 : index
    %c0_22 = arith.constant 0 : index
    %50 = vector.load %arg8[%49, %c0_21, %c0_22] : memref<8x8x128xf32, #tpu.memory_space<vmem>>, vector<1x8x128xf32>
    %51 = vector.shape_cast %50 : vector<1x8x128xf32> to vector<8x128xf32>
    %52 = vector.shape_cast %48 : vector<8x128xf32> to vector<1x8x128xf32>
    tpu.vector_store %arg8[%49, %c0_21, %c0_22], %52 {strides = array<i32>} : memref<8x8x128xf32, #tpu.memory_space<vmem>>, vector<1x8x128xf32>,
    %c1_i32 = arith.constant 1 : i32
    %c8_i32_23 = arith.constant 8 : i32
    %53 = arith.muli %c1_i32, %c8_i32_23 : i32
    %54 = tpu.assume_multiple %53, 8 : i32
    %55 = arith.index_cast %54 : i32 to index
    %c0_24 = arith.constant 0 : index
    %56 = vector.load %arg10[%55, %c0_24] : memref<64x384xf32, #tpu.memory_space<vmem>>, vector<8x384xf32>
    %57 = arith.truncf %48 : vector<8x128xf32> to vector<8x128xbf16>
    %cst_25 = arith.constant dense<0.000000e+00> : vector<8x384xf32>
    %58 = tpu.matmul %57, %11, %cst_25 {dimension_numbers = #tpu.dot_dimension_numbers<[1], [0], [0], [1], [0, 0, 1, 1], [], []>} : vector<8x128xbf16>, vector<128x384xbf16>, vector<8x384xf32> -> vector<8x384xf32>
    %59 = vector.extract_strided_slice %56 {offsets = [0, 0], sizes = [8, 128], strides = [1, 1]} : vector<8x384xf32> to vector<8x128xf32>
    %60 = vector.extract_strided_slice %58 {offsets = [0, 0], sizes = [8, 128], strides = [1, 1]} : vector<8x384xf32> to vector<8x128xf32>
    %61 = arith.addf %59, %60 : vector<8x128xf32>
    %62 = arith.negf %61 : vector<8x128xf32>
    %63 = math.exp %62 : vector<8x128xf32>
    %cst_26 = arith.constant 1.000000e+00 : f32
    %64 = vector.broadcast %cst_26 : f32 to vector<8x128xf32>
    %65 = arith.addf %64, %63 : vector<8x128xf32>
    %66 = arith.divf %64, %65 : vector<8x128xf32>
    %67 = vector.extract_strided_slice %56 {offsets = [0, 128], sizes = [8, 128], strides = [1, 1]} : vector<8x384xf32> to vector<8x128xf32>
    %68 = vector.extract_strided_slice %58 {offsets = [0, 128], sizes = [8, 128], strides = [1, 1]} : vector<8x384xf32> to vector<8x128xf32>
    %69 = arith.addf %67, %68 : vector<8x128xf32>
    %70 = arith.negf %69 : vector<8x128xf32>
    %71 = math.exp %70 : vector<8x128xf32>
    %cst_27 = arith.constant 1.000000e+00 : f32
    %72 = vector.broadcast %cst_27 : f32 to vector<8x128xf32>
    %73 = arith.addf %72, %71 : vector<8x128xf32>
    %74 = arith.divf %72, %73 : vector<8x128xf32>
    %75 = vector.extract_strided_slice %56 {offsets = [0, 256], sizes = [8, 128], strides = [1, 1]} : vector<8x384xf32> to vector<8x128xf32>
    %76 = vector.extract_strided_slice %58 {offsets = [0, 256], sizes = [8, 128], strides = [1, 1]} : vector<8x384xf32> to vector<8x128xf32>
    %77 = arith.addf %76, %14 : vector<8x128xf32>
    %78 = arith.mulf %66, %77 : vector<8x128xf32>
    %79 = arith.addf %75, %78 : vector<8x128xf32>
    %80 = math.tanh %79 : vector<8x128xf32>
    %cst_28 = arith.constant 1.000000e+00 : f32
    %81 = vector.broadcast %cst_28 : f32 to vector<8x128xf32>
    %82 = arith.subf %81, %74 : vector<8x128xf32>
    %83 = arith.mulf %82, %80 : vector<8x128xf32>
    %84 = arith.mulf %74, %48 : vector<8x128xf32>
    %85 = arith.addf %83, %84 : vector<8x128xf32>
    %86 = arith.index_cast %c1_i32 : i32 to index
    %c0_29 = arith.constant 0 : index
    %c0_30 = arith.constant 0 : index
    %87 = vector.load %arg8[%86, %c0_29, %c0_30] : memref<8x8x128xf32, #tpu.memory_space<vmem>>, vector<1x8x128xf32>
    %88 = vector.shape_cast %87 : vector<1x8x128xf32> to vector<8x128xf32>
    %89 = vector.shape_cast %85 : vector<8x128xf32> to vector<1x8x128xf32>
    tpu.vector_store %arg8[%86, %c0_29, %c0_30], %89 {strides = array<i32>} : memref<8x8x128xf32, #tpu.memory_space<vmem>>, vector<1x8x128xf32>,
    %c2_i32 = arith.constant 2 : i32
    %c8_i32_31 = arith.constant 8 : i32
    %90 = arith.muli %c2_i32, %c8_i32_31 : i32
    %91 = tpu.assume_multiple %90, 8 : i32
    %92 = arith.index_cast %91 : i32 to index
    %c0_32 = arith.constant 0 : index
    %93 = vector.load %arg10[%92, %c0_32] : memref<64x384xf32, #tpu.memory_space<vmem>>, vector<8x384xf32>
    %94 = arith.truncf %85 : vector<8x128xf32> to vector<8x128xbf16>
    %cst_33 = arith.constant dense<0.000000e+00> : vector<8x384xf32>
    %95 = tpu.matmul %94, %11, %cst_33 {dimension_numbers = #tpu.dot_dimension_numbers<[1], [0], [0], [1], [0, 0, 1, 1], [], []>} : vector<8x128xbf16>, vector<128x384xbf16>, vector<8x384xf32> -> vector<8x384xf32>
    %96 = vector.extract_strided_slice %93 {offsets = [0, 0], sizes = [8, 128], strides = [1, 1]} : vector<8x384xf32> to vector<8x128xf32>
    %97 = vector.extract_strided_slice %95 {offsets = [0, 0], sizes = [8, 128], strides = [1, 1]} : vector<8x384xf32> to vector<8x128xf32>
    %98 = arith.addf %96, %97 : vector<8x128xf32>
    %99 = arith.negf %98 : vector<8x128xf32>
    %100 = math.exp %99 : vector<8x128xf32>
    %cst_34 = arith.constant 1.000000e+00 : f32
    %101 = vector.broadcast %cst_34 : f32 to vector<8x128xf32>
    %102 = arith.addf %101, %100 : vector<8x128xf32>
    %103 = arith.divf %101, %102 : vector<8x128xf32>
    %104 = vector.extract_strided_slice %93 {offsets = [0, 128], sizes = [8, 128], strides = [1, 1]} : vector<8x384xf32> to vector<8x128xf32>
    %105 = vector.extract_strided_slice %95 {offsets = [0, 128], sizes = [8, 128], strides = [1, 1]} : vector<8x384xf32> to vector<8x128xf32>
    %106 = arith.addf %104, %105 : vector<8x128xf32>
    %107 = arith.negf %106 : vector<8x128xf32>
    %108 = math.exp %107 : vector<8x128xf32>
    %cst_35 = arith.constant 1.000000e+00 : f32
    %109 = vector.broadcast %cst_35 : f32 to vector<8x128xf32>
    %110 = arith.addf %109, %108 : vector<8x128xf32>
    %111 = arith.divf %109, %110 : vector<8x128xf32>
    %112 = vector.extract_strided_slice %93 {offsets = [0, 256], sizes = [8, 128], strides = [1, 1]} : vector<8x384xf32> to vector<8x128xf32>
    %113 = vector.extract_strided_slice %95 {offsets = [0, 256], sizes = [8, 128], strides = [1, 1]} : vector<8x384xf32> to vector<8x128xf32>
    %114 = arith.addf %113, %14 : vector<8x128xf32>
    %115 = arith.mulf %103, %114 : vector<8x128xf32>
    %116 = arith.addf %112, %115 : vector<8x128xf32>
    %117 = math.tanh %116 : vector<8x128xf32>
    %cst_36 = arith.constant 1.000000e+00 : f32
    %118 = vector.broadcast %cst_36 : f32 to vector<8x128xf32>
    %119 = arith.subf %118, %111 : vector<8x128xf32>
    %120 = arith.mulf %119, %117 : vector<8x128xf32>
    %121 = arith.mulf %111, %85 : vector<8x128xf32>
    %122 = arith.addf %120, %121 : vector<8x128xf32>
    %123 = arith.index_cast %c2_i32 : i32 to index
    %c0_37 = arith.constant 0 : index
    %c0_38 = arith.constant 0 : index
    %124 = vector.load %arg8[%123, %c0_37, %c0_38] : memref<8x8x128xf32, #tpu.memory_space<vmem>>, vector<1x8x128xf32>
    %125 = vector.shape_cast %124 : vector<1x8x128xf32> to vector<8x128xf32>
    %126 = vector.shape_cast %122 : vector<8x128xf32> to vector<1x8x128xf32>
    tpu.vector_store %arg8[%123, %c0_37, %c0_38], %126 {strides = array<i32>} : memref<8x8x128xf32, #tpu.memory_space<vmem>>, vector<1x8x128xf32>,
    %c3_i32 = arith.constant 3 : i32
    %c8_i32_39 = arith.constant 8 : i32
    %127 = arith.muli %c3_i32, %c8_i32_39 : i32
    %128 = tpu.assume_multiple %127, 8 : i32
    %129 = arith.index_cast %128 : i32 to index
    %c0_40 = arith.constant 0 : index
    %130 = vector.load %arg10[%129, %c0_40] : memref<64x384xf32, #tpu.memory_space<vmem>>, vector<8x384xf32>
    %131 = arith.truncf %122 : vector<8x128xf32> to vector<8x128xbf16>
    %cst_41 = arith.constant dense<0.000000e+00> : vector<8x384xf32>
    %132 = tpu.matmul %131, %11, %cst_41 {dimension_numbers = #tpu.dot_dimension_numbers<[1], [0], [0], [1], [0, 0, 1, 1], [], []>} : vector<8x128xbf16>, vector<128x384xbf16>, vector<8x384xf32> -> vector<8x384xf32>
    %133 = vector.extract_strided_slice %130 {offsets = [0, 0], sizes = [8, 128], strides = [1, 1]} : vector<8x384xf32> to vector<8x128xf32>
    %134 = vector.extract_strided_slice %132 {offsets = [0, 0], sizes = [8, 128], strides = [1, 1]} : vector<8x384xf32> to vector<8x128xf32>
    %135 = arith.addf %133, %134 : vector<8x128xf32>
    %136 = arith.negf %135 : vector<8x128xf32>
    %137 = math.exp %136 : vector<8x128xf32>
    %cst_42 = arith.constant 1.000000e+00 : f32
    %138 = vector.broadcast %cst_42 : f32 to vector<8x128xf32>
    %139 = arith.addf %138, %137 : vector<8x128xf32>
    %140 = arith.divf %138, %139 : vector<8x128xf32>
    %141 = vector.extract_strided_slice %130 {offsets = [0, 128], sizes = [8, 128], strides = [1, 1]} : vector<8x384xf32> to vector<8x128xf32>
    %142 = vector.extract_strided_slice %132 {offsets = [0, 128], sizes = [8, 128], strides = [1, 1]} : vector<8x384xf32> to vector<8x128xf32>
    %143 = arith.addf %141, %142 : vector<8x128xf32>
    %144 = arith.negf %143 : vector<8x128xf32>
    %145 = math.exp %144 : vector<8x128xf32>
    %cst_43 = arith.constant 1.000000e+00 : f32
    %146 = vector.broadcast %cst_43 : f32 to vector<8x128xf32>
    %147 = arith.addf %146, %145 : vector<8x128xf32>
    %148 = arith.divf %146, %147 : vector<8x128xf32>
    %149 = vector.extract_strided_slice %130 {offsets = [0, 256], sizes = [8, 128], strides = [1, 1]} : vector<8x384xf32> to vector<8x128xf32>
    %150 = vector.extract_strided_slice %132 {offsets = [0, 256], sizes = [8, 128], strides = [1, 1]} : vector<8x384xf32> to vector<8x128xf32>
    %151 = arith.addf %150, %14 : vector<8x128xf32>
    %152 = arith.mulf %140, %151 : vector<8x128xf32>
    %153 = arith.addf %149, %152 : vector<8x128xf32>
    %154 = math.tanh %153 : vector<8x128xf32>
    %cst_44 = arith.constant 1.000000e+00 : f32
    %155 = vector.broadcast %cst_44 : f32 to vector<8x128xf32>
    %156 = arith.subf %155, %148 : vector<8x128xf32>
    %157 = arith.mulf %156, %154 : vector<8x128xf32>
    %158 = arith.mulf %148, %122 : vector<8x128xf32>
    %159 = arith.addf %157, %158 : vector<8x128xf32>
    %160 = arith.index_cast %c3_i32 : i32 to index
    %c0_45 = arith.constant 0 : index
    %c0_46 = arith.constant 0 : index
    %161 = vector.load %arg8[%160, %c0_45, %c0_46] : memref<8x8x128xf32, #tpu.memory_space<vmem>>, vector<1x8x128xf32>
    %162 = vector.shape_cast %161 : vector<1x8x128xf32> to vector<8x128xf32>
    %163 = vector.shape_cast %159 : vector<8x128xf32> to vector<1x8x128xf32>
    tpu.vector_store %arg8[%160, %c0_45, %c0_46], %163 {strides = array<i32>} : memref<8x8x128xf32, #tpu.memory_space<vmem>>, vector<1x8x128xf32>,
    %c4_i32 = arith.constant 4 : i32
    %c8_i32_47 = arith.constant 8 : i32
    %164 = arith.muli %c4_i32, %c8_i32_47 : i32
    %165 = tpu.assume_multiple %164, 8 : i32
    %166 = arith.index_cast %165 : i32 to index
    %c0_48 = arith.constant 0 : index
    %167 = vector.load %arg10[%166, %c0_48] : memref<64x384xf32, #tpu.memory_space<vmem>>, vector<8x384xf32>
    %168 = arith.truncf %159 : vector<8x128xf32> to vector<8x128xbf16>
    %cst_49 = arith.constant dense<0.000000e+00> : vector<8x384xf32>
    %169 = tpu.matmul %168, %11, %cst_49 {dimension_numbers = #tpu.dot_dimension_numbers<[1], [0], [0], [1], [0, 0, 1, 1], [], []>} : vector<8x128xbf16>, vector<128x384xbf16>, vector<8x384xf32> -> vector<8x384xf32>
    %170 = vector.extract_strided_slice %167 {offsets = [0, 0], sizes = [8, 128], strides = [1, 1]} : vector<8x384xf32> to vector<8x128xf32>
    %171 = vector.extract_strided_slice %169 {offsets = [0, 0], sizes = [8, 128], strides = [1, 1]} : vector<8x384xf32> to vector<8x128xf32>
    %172 = arith.addf %170, %171 : vector<8x128xf32>
    %173 = arith.negf %172 : vector<8x128xf32>
    %174 = math.exp %173 : vector<8x128xf32>
    %cst_50 = arith.constant 1.000000e+00 : f32
    %175 = vector.broadcast %cst_50 : f32 to vector<8x128xf32>
    %176 = arith.addf %175, %174 : vector<8x128xf32>
    %177 = arith.divf %175, %176 : vector<8x128xf32>
    %178 = vector.extract_strided_slice %167 {offsets = [0, 128], sizes = [8, 128], strides = [1, 1]} : vector<8x384xf32> to vector<8x128xf32>
    %179 = vector.extract_strided_slice %169 {offsets = [0, 128], sizes = [8, 128], strides = [1, 1]} : vector<8x384xf32> to vector<8x128xf32>
    %180 = arith.addf %178, %179 : vector<8x128xf32>
    %181 = arith.negf %180 : vector<8x128xf32>
    %182 = math.exp %181 : vector<8x128xf32>
    %cst_51 = arith.constant 1.000000e+00 : f32
    %183 = vector.broadcast %cst_51 : f32 to vector<8x128xf32>
    %184 = arith.addf %183, %182 : vector<8x128xf32>
    %185 = arith.divf %183, %184 : vector<8x128xf32>
    %186 = vector.extract_strided_slice %167 {offsets = [0, 256], sizes = [8, 128], strides = [1, 1]} : vector<8x384xf32> to vector<8x128xf32>
    %187 = vector.extract_strided_slice %169 {offsets = [0, 256], sizes = [8, 128], strides = [1, 1]} : vector<8x384xf32> to vector<8x128xf32>
    %188 = arith.addf %187, %14 : vector<8x128xf32>
    %189 = arith.mulf %177, %188 : vector<8x128xf32>
    %190 = arith.addf %186, %189 : vector<8x128xf32>
    %191 = math.tanh %190 : vector<8x128xf32>
    %cst_52 = arith.constant 1.000000e+00 : f32
    %192 = vector.broadcast %cst_52 : f32 to vector<8x128xf32>
    %193 = arith.subf %192, %185 : vector<8x128xf32>
    %194 = arith.mulf %193, %191 : vector<8x128xf32>
    %195 = arith.mulf %185, %159 : vector<8x128xf32>
    %196 = arith.addf %194, %195 : vector<8x128xf32>
    %197 = arith.index_cast %c4_i32 : i32 to index
    %c0_53 = arith.constant 0 : index
    %c0_54 = arith.constant 0 : index
    %198 = vector.load %arg8[%197, %c0_53, %c0_54] : memref<8x8x128xf32, #tpu.memory_space<vmem>>, vector<1x8x128xf32>
    %199 = vector.shape_cast %198 : vector<1x8x128xf32> to vector<8x128xf32>
    %200 = vector.shape_cast %196 : vector<8x128xf32> to vector<1x8x128xf32>
    tpu.vector_store %arg8[%197, %c0_53, %c0_54], %200 {strides = array<i32>} : memref<8x8x128xf32, #tpu.memory_space<vmem>>, vector<1x8x128xf32>,
    %c5_i32 = arith.constant 5 : i32
    %c8_i32_55 = arith.constant 8 : i32
    %201 = arith.muli %c5_i32, %c8_i32_55 : i32
    %202 = tpu.assume_multiple %201, 8 : i32
    %203 = arith.index_cast %202 : i32 to index
    %c0_56 = arith.constant 0 : index
    %204 = vector.load %arg10[%203, %c0_56] : memref<64x384xf32, #tpu.memory_space<vmem>>, vector<8x384xf32>
    %205 = arith.truncf %196 : vector<8x128xf32> to vector<8x128xbf16>
    %cst_57 = arith.constant dense<0.000000e+00> : vector<8x384xf32>
    %206 = tpu.matmul %205, %11, %cst_57 {dimension_numbers = #tpu.dot_dimension_numbers<[1], [0], [0], [1], [0, 0, 1, 1], [], []>} : vector<8x128xbf16>, vector<128x384xbf16>, vector<8x384xf32> -> vector<8x384xf32>
    %207 = vector.extract_strided_slice %204 {offsets = [0, 0], sizes = [8, 128], strides = [1, 1]} : vector<8x384xf32> to vector<8x128xf32>
    %208 = vector.extract_strided_slice %206 {offsets = [0, 0], sizes = [8, 128], strides = [1, 1]} : vector<8x384xf32> to vector<8x128xf32>
    %209 = arith.addf %207, %208 : vector<8x128xf32>
    %210 = arith.negf %209 : vector<8x128xf32>
    %211 = math.exp %210 : vector<8x128xf32>
    %cst_58 = arith.constant 1.000000e+00 : f32
    %212 = vector.broadcast %cst_58 : f32 to vector<8x128xf32>
    %213 = arith.addf %212, %211 : vector<8x128xf32>
    %214 = arith.divf %212, %213 : vector<8x128xf32>
    %215 = vector.extract_strided_slice %204 {offsets = [0, 128], sizes = [8, 128], strides = [1, 1]} : vector<8x384xf32> to vector<8x128xf32>
    %216 = vector.extract_strided_slice %206 {offsets = [0, 128], sizes = [8, 128], strides = [1, 1]} : vector<8x384xf32> to vector<8x128xf32>
    %217 = arith.addf %215, %216 : vector<8x128xf32>
    %218 = arith.negf %217 : vector<8x128xf32>
    %219 = math.exp %218 : vector<8x128xf32>
    %cst_59 = arith.constant 1.000000e+00 : f32
    %220 = vector.broadcast %cst_59 : f32 to vector<8x128xf32>
    %221 = arith.addf %220, %219 : vector<8x128xf32>
    %222 = arith.divf %220, %221 : vector<8x128xf32>
    %223 = vector.extract_strided_slice %204 {offsets = [0, 256], sizes = [8, 128], strides = [1, 1]} : vector<8x384xf32> to vector<8x128xf32>
    %224 = vector.extract_strided_slice %206 {offsets = [0, 256], sizes = [8, 128], strides = [1, 1]} : vector<8x384xf32> to vector<8x128xf32>
    %225 = arith.addf %224, %14 : vector<8x128xf32>
    %226 = arith.mulf %214, %225 : vector<8x128xf32>
    %227 = arith.addf %223, %226 : vector<8x128xf32>
    %228 = math.tanh %227 : vector<8x128xf32>
    %cst_60 = arith.constant 1.000000e+00 : f32
    %229 = vector.broadcast %cst_60 : f32 to vector<8x128xf32>
    %230 = arith.subf %229, %222 : vector<8x128xf32>
    %231 = arith.mulf %230, %228 : vector<8x128xf32>
    %232 = arith.mulf %222, %196 : vector<8x128xf32>
    %233 = arith.addf %231, %232 : vector<8x128xf32>
    %234 = arith.index_cast %c5_i32 : i32 to index
    %c0_61 = arith.constant 0 : index
    %c0_62 = arith.constant 0 : index
    %235 = vector.load %arg8[%234, %c0_61, %c0_62] : memref<8x8x128xf32, #tpu.memory_space<vmem>>, vector<1x8x128xf32>
    %236 = vector.shape_cast %235 : vector<1x8x128xf32> to vector<8x128xf32>
    %237 = vector.shape_cast %233 : vector<8x128xf32> to vector<1x8x128xf32>
    tpu.vector_store %arg8[%234, %c0_61, %c0_62], %237 {strides = array<i32>} : memref<8x8x128xf32, #tpu.memory_space<vmem>>, vector<1x8x128xf32>,
    %c6_i32 = arith.constant 6 : i32
    %c8_i32_63 = arith.constant 8 : i32
    %238 = arith.muli %c6_i32, %c8_i32_63 : i32
    %239 = tpu.assume_multiple %238, 8 : i32
    %240 = arith.index_cast %239 : i32 to index
    %c0_64 = arith.constant 0 : index
    %241 = vector.load %arg10[%240, %c0_64] : memref<64x384xf32, #tpu.memory_space<vmem>>, vector<8x384xf32>
    %242 = arith.truncf %233 : vector<8x128xf32> to vector<8x128xbf16>
    %cst_65 = arith.constant dense<0.000000e+00> : vector<8x384xf32>
    %243 = tpu.matmul %242, %11, %cst_65 {dimension_numbers = #tpu.dot_dimension_numbers<[1], [0], [0], [1], [0, 0, 1, 1], [], []>} : vector<8x128xbf16>, vector<128x384xbf16>, vector<8x384xf32> -> vector<8x384xf32>
    %244 = vector.extract_strided_slice %241 {offsets = [0, 0], sizes = [8, 128], strides = [1, 1]} : vector<8x384xf32> to vector<8x128xf32>
    %245 = vector.extract_strided_slice %243 {offsets = [0, 0], sizes = [8, 128], strides = [1, 1]} : vector<8x384xf32> to vector<8x128xf32>
    %246 = arith.addf %244, %245 : vector<8x128xf32>
    %247 = arith.negf %246 : vector<8x128xf32>
    %248 = math.exp %247 : vector<8x128xf32>
    %cst_66 = arith.constant 1.000000e+00 : f32
    %249 = vector.broadcast %cst_66 : f32 to vector<8x128xf32>
    %250 = arith.addf %249, %248 : vector<8x128xf32>
    %251 = arith.divf %249, %250 : vector<8x128xf32>
    %252 = vector.extract_strided_slice %241 {offsets = [0, 128], sizes = [8, 128], strides = [1, 1]} : vector<8x384xf32> to vector<8x128xf32>
    %253 = vector.extract_strided_slice %243 {offsets = [0, 128], sizes = [8, 128], strides = [1, 1]} : vector<8x384xf32> to vector<8x128xf32>
    %254 = arith.addf %252, %253 : vector<8x128xf32>
    %255 = arith.negf %254 : vector<8x128xf32>
    %256 = math.exp %255 : vector<8x128xf32>
    %cst_67 = arith.constant 1.000000e+00 : f32
    %257 = vector.broadcast %cst_67 : f32 to vector<8x128xf32>
    %258 = arith.addf %257, %256 : vector<8x128xf32>
    %259 = arith.divf %257, %258 : vector<8x128xf32>
    %260 = vector.extract_strided_slice %241 {offsets = [0, 256], sizes = [8, 128], strides = [1, 1]} : vector<8x384xf32> to vector<8x128xf32>
    %261 = vector.extract_strided_slice %243 {offsets = [0, 256], sizes = [8, 128], strides = [1, 1]} : vector<8x384xf32> to vector<8x128xf32>
    %262 = arith.addf %261, %14 : vector<8x128xf32>
    %263 = arith.mulf %251, %262 : vector<8x128xf32>
    %264 = arith.addf %260, %263 : vector<8x128xf32>
    %265 = math.tanh %264 : vector<8x128xf32>
    %cst_68 = arith.constant 1.000000e+00 : f32
    %266 = vector.broadcast %cst_68 : f32 to vector<8x128xf32>
    %267 = arith.subf %266, %259 : vector<8x128xf32>
    %268 = arith.mulf %267, %265 : vector<8x128xf32>
    %269 = arith.mulf %259, %233 : vector<8x128xf32>
    %270 = arith.addf %268, %269 : vector<8x128xf32>
    %271 = arith.index_cast %c6_i32 : i32 to index
    %c0_69 = arith.constant 0 : index
    %c0_70 = arith.constant 0 : index
    %272 = vector.load %arg8[%271, %c0_69, %c0_70] : memref<8x8x128xf32, #tpu.memory_space<vmem>>, vector<1x8x128xf32>
    %273 = vector.shape_cast %272 : vector<1x8x128xf32> to vector<8x128xf32>
    %274 = vector.shape_cast %270 : vector<8x128xf32> to vector<1x8x128xf32>
    tpu.vector_store %arg8[%271, %c0_69, %c0_70], %274 {strides = array<i32>} : memref<8x8x128xf32, #tpu.memory_space<vmem>>, vector<1x8x128xf32>,
    %c7_i32 = arith.constant 7 : i32
    %c8_i32_71 = arith.constant 8 : i32
    %275 = arith.muli %c7_i32, %c8_i32_71 : i32
    %276 = tpu.assume_multiple %275, 8 : i32
    %277 = arith.index_cast %276 : i32 to index
    %c0_72 = arith.constant 0 : index
    %278 = vector.load %arg10[%277, %c0_72] : memref<64x384xf32, #tpu.memory_space<vmem>>, vector<8x384xf32>
    %279 = arith.truncf %270 : vector<8x128xf32> to vector<8x128xbf16>
    %cst_73 = arith.constant dense<0.000000e+00> : vector<8x384xf32>
    %280 = tpu.matmul %279, %11, %cst_73 {dimension_numbers = #tpu.dot_dimension_numbers<[1], [0], [0], [1], [0, 0, 1, 1], [], []>} : vector<8x128xbf16>, vector<128x384xbf16>, vector<8x384xf32> -> vector<8x384xf32>
    %281 = vector.extract_strided_slice %278 {offsets = [0, 0], sizes = [8, 128], strides = [1, 1]} : vector<8x384xf32> to vector<8x128xf32>
    %282 = vector.extract_strided_slice %280 {offsets = [0, 0], sizes = [8, 128], strides = [1, 1]} : vector<8x384xf32> to vector<8x128xf32>
    %283 = arith.addf %281, %282 : vector<8x128xf32>
    %284 = arith.negf %283 : vector<8x128xf32>
    %285 = math.exp %284 : vector<8x128xf32>
    %cst_74 = arith.constant 1.000000e+00 : f32
    %286 = vector.broadcast %cst_74 : f32 to vector<8x128xf32>
    %287 = arith.addf %286, %285 : vector<8x128xf32>
    %288 = arith.divf %286, %287 : vector<8x128xf32>
    %289 = vector.extract_strided_slice %278 {offsets = [0, 128], sizes = [8, 128], strides = [1, 1]} : vector<8x384xf32> to vector<8x128xf32>
    %290 = vector.extract_strided_slice %280 {offsets = [0, 128], sizes = [8, 128], strides = [1, 1]} : vector<8x384xf32> to vector<8x128xf32>
    %291 = arith.addf %289, %290 : vector<8x128xf32>
    %292 = arith.negf %291 : vector<8x128xf32>
    %293 = math.exp %292 : vector<8x128xf32>
    %cst_75 = arith.constant 1.000000e+00 : f32
    %294 = vector.broadcast %cst_75 : f32 to vector<8x128xf32>
    %295 = arith.addf %294, %293 : vector<8x128xf32>
    %296 = arith.divf %294, %295 : vector<8x128xf32>
    %297 = vector.extract_strided_slice %278 {offsets = [0, 256], sizes = [8, 128], strides = [1, 1]} : vector<8x384xf32> to vector<8x128xf32>
    %298 = vector.extract_strided_slice %280 {offsets = [0, 256], sizes = [8, 128], strides = [1, 1]} : vector<8x384xf32> to vector<8x128xf32>
    %299 = arith.addf %298, %14 : vector<8x128xf32>
    %300 = arith.mulf %288, %299 : vector<8x128xf32>
    %301 = arith.addf %297, %300 : vector<8x128xf32>
    %302 = math.tanh %301 : vector<8x128xf32>
    %cst_76 = arith.constant 1.000000e+00 : f32
    %303 = vector.broadcast %cst_76 : f32 to vector<8x128xf32>
    %304 = arith.subf %303, %296 : vector<8x128xf32>
    %305 = arith.mulf %304, %302 : vector<8x128xf32>
    %306 = arith.mulf %296, %270 : vector<8x128xf32>
    %307 = arith.addf %305, %306 : vector<8x128xf32>
    %308 = arith.index_cast %c7_i32 : i32 to index
    %c0_77 = arith.constant 0 : index
    %c0_78 = arith.constant 0 : index
    %309 = vector.load %arg8[%308, %c0_77, %c0_78] : memref<8x8x128xf32, #tpu.memory_space<vmem>>, vector<1x8x128xf32>
    %310 = vector.shape_cast %309 : vector<1x8x128xf32> to vector<8x128xf32>
    %311 = vector.shape_cast %307 : vector<8x128xf32> to vector<1x8x128xf32>
    tpu.vector_store %arg8[%308, %c0_77, %c0_78], %311 {strides = array<i32>} : memref<8x8x128xf32, #tpu.memory_space<vmem>>, vector<1x8x128xf32>,
    %c8_i32_79 = arith.constant 8 : i32
    %c0_80 = arith.constant 0 : index
    %c0_81 = arith.constant 0 : index
    %312 = vector.load %arg11[%c0_80, %c0_81] : memref<8x128xf32, #tpu.memory_space<vmem>>, vector<8x128xf32>
    tpu.vector_store %arg11[%c0_80, %c0_81], %307 {strides = array<i32>} : memref<8x128xf32, #tpu.memory_space<vmem>>, vector<8x128xf32>,
    %c0_82 = arith.constant 0 : index
    %c0_83 = arith.constant 0 : index
    %313 = vector.load %arg9[%c0_82, %c0_83] : memref<8x128xf32, #tpu.memory_space<vmem>>, vector<8x128xf32>
    tpu.vector_store %arg9[%c0_82, %c0_83], %307 {strides = array<i32>} : memref<8x128xf32, #tpu.memory_space<vmem>>, vector<8x128xf32>,
    return
  }
  func.func @transform_0(%arg0: i32, %arg1: i32) -> (i32, i32, i32) {
    %c0_i32 = arith.constant 0 : i32
    %c0_i32_0 = arith.constant 0 : i32
    return %arg1, %arg0, %c0_i32 : i32, i32, i32
  }
  func.func @transform_1(%arg0: i32, %arg1: i32) -> (i32, i32) {
    %c0_i32 = arith.constant 0 : i32
    %c0_i32_0 = arith.constant 0 : i32
    %c0_i32_1 = arith.constant 0 : i32
    return %c0_i32, %c0_i32_0 : i32, i32
  }
  func.func @transform_2(%arg0: i32, %arg1: i32) -> (i32, i32) {
    %c0_i32 = arith.constant 0 : i32
    %c0_i32_0 = arith.constant 0 : i32
    %c0_i32_1 = arith.constant 0 : i32
    return %c0_i32, %c0_i32_0 : i32, i32
  }
  func.func @transform_3(%arg0: i32, %arg1: i32) -> (i32, i32) {
    %c0_i32 = arith.constant 0 : i32
    %c0_i32_0 = arith.constant 0 : i32
    %c0_i32_1 = arith.constant 0 : i32
    return %c0_i32, %c0_i32_0 : i32, i32
  }
  func.func @transform_4(%arg0: i32, %arg1: i32) -> (i32, i32) {
    %c0_i32 = arith.constant 0 : i32
    %c0_i32_0 = arith.constant 0 : i32
    %c0_i32_1 = arith.constant 0 : i32
    return %c0_i32, %c0_i32_0 : i32, i32
  }
  func.func @transform_5(%arg0: i32, %arg1: i32) -> (i32, i32) {
    %c0_i32 = arith.constant 0 : i32
    %c0_i32_0 = arith.constant 0 : i32
    return %arg0, %c0_i32 : i32, i32
  }
  func.func @transform_6(%arg0: i32, %arg1: i32) -> (i32, i32, i32) {
    %c0_i32 = arith.constant 0 : i32
    %c0_i32_0 = arith.constant 0 : i32
    return %arg1, %arg0, %c0_i32 : i32, i32, i32
  }
  func.func @transform_7(%arg0: i32, %arg1: i32) -> (i32, i32) {
    %c0_i32 = arith.constant 0 : i32
    %c0_i32_0 = arith.constant 0 : i32
    return %arg0, %c0_i32 : i32, i32
  }
}

</mosaic_0001>

<llo_original>
// kernel: encoder_gru_forward.1
$region0: #{encoder_gru_forward.1}
  #allocation0 [shape = 'u32[]', space=smem, size = 0x4, offset = 0x4, fixed_abs, tag = 'smem constant byte address 0x4 - core index']
  #allocation1 [shape = 'u32[72,128]{1,0:T(1,128)}', space=vmem, size = 0x9000, scoped, tag = 'internal scratch']
  #allocation2 [shape = 'f32[64,384]{1,0:T(8,128)}', space=vmem, size = 0x18000, scoped, tag = 'scratch operand']
  #allocation3 [shape = 'f32[8,128]{1,0:T(8,128)}', space=vmem, size = 0x1000, scoped, tag = 'scratch operand']
  %s0 = inlined_call_operand.vmem [shape: bf16[8,8,32], index: 0, kind: input, shape index: {}]
  %s1 = inlined_call_operand.vmem [shape: bf16[32,384], index: 1, kind: input, shape index: {}]
  %s2 = inlined_call_operand.vmem [shape: bf16[128,384], index: 2, kind: input, shape index: {}]
  %s3 = inlined_call_operand.vmem [shape: f32[1,384], index: 3, kind: input, shape index: {}]
  %s4 = inlined_call_operand.vmem [shape: f32[1,128], index: 4, kind: input, shape index: {}]
  %s5 = inlined_call_operand.vmem [shape: f32[8,128], index: 5, kind: input, shape index: {}]
  %s6 = inlined_call_operand.vmem [shape: f32[8,8,128], index: 6, kind: output, shape index: {0}]
  %s7 = inlined_call_operand.vmem [shape: f32[8,128], index: 7, kind: output, shape index: {1}]
  %8 = xla_tuple %s6, %s7
  %s9 = sld [smem:[#allocation0]]
  $region46: #{encoder_gru_forward.1} parent=0
    _
  %s11 = ssub.s32 1, %s9
  %s12 = scalar_select 0, %s11, %s9
  // Predicated region
  $region2: #{encoder_gru_forward.1} parent=0 // pred_check
    _
  $region3: #{encoder_gru_forward.1} parent=0 // pred_check_branch
    %14 = sbr.rel (0) target = $region5
  $region4: #{encoder_gru_forward.1} parent=0 // pred_region
    _
  $region5: #{encoder_gru_forward.1} parent=0 // pred_fallthru
    _
  // Predicated region
  $region6: #{encoder_gru_forward.1} parent=0 // pred_check
    _
  $region7: #{encoder_gru_forward.1} parent=0 // pred_check_branch
    %16 = sbr.rel (0) target = $region9
  $region8: #{encoder_gru_forward.1} parent=0 // pred_region
    _
  $region9: #{encoder_gru_forward.1} parent=0 // pred_fallthru
    _
  // Predicated region
  $region10: #{encoder_gru_forward.1} parent=0 // pred_check
    _
  $region11: #{encoder_gru_forward.1} parent=0 // pred_check_branch
    %18 = sbr.rel (0) target = $region13
  $region12: #{encoder_gru_forward.1} parent=0 // pred_region
    _
  $region13: #{encoder_gru_forward.1} parent=0 // pred_fallthru
    _
  // Predicated region
  $region14: #{encoder_gru_forward.1} parent=0 // pred_check
    _
  $region15: #{encoder_gru_forward.1} parent=0 // pred_check_branch
    %20 = sbr.rel (0) target = $region17
  $region16: #{encoder_gru_forward.1} parent=0 // pred_region
    _
  $region17: #{encoder_gru_forward.1} parent=0 // pred_fallthru
    _
  // Predicated region
  $region18: #{encoder_gru_forward.1} parent=0 // pred_check
    _
  $region19: #{encoder_gru_forward.1} parent=0 // pred_check_branch
    %22 = sbr.rel (0) target = $region21
  $region20: #{encoder_gru_forward.1} parent=0 // pred_region
    _
  $region21: #{encoder_gru_forward.1} parent=0 // pred_fallthru
    _
  // Predicated region
  $region22: #{encoder_gru_forward.1} parent=0 // pred_check
    _
  $region23: #{encoder_gru_forward.1} parent=0 // pred_check_branch
    %24 = sbr.rel (0) target = $region25
  $region24: #{encoder_gru_forward.1} parent=0 // pred_region
    _
  $region25: #{encoder_gru_forward.1} parent=0 // pred_fallthru
    _
  %p26 = scmp.eq.s32.totalorder 0, 0
  // Predicated region
  $region26: #{encoder_gru_forward.1} parent=0 // pred_check
    %p27 = pneg %p26
  $region27: #{encoder_gru_forward.1} parent=0 // pred_check_branch
    %29 = sbr.rel (%p27) target = $region29
  $region28: #{encoder_gru_forward.1} parent=0 // pred_region
    %v30 = vld [vmem:[%s5] sm:$0xff]
    %31 = vst [vmem:[#allocation3] sm:$0xff] %v30
  $region29: #{encoder_gru_forward.1} parent=0 // pred_fallthru
    _
  %v32 = vld [vmem:[%s0] sm:$0xf]
  %v33 = vld [vmem:[%s0 + $0x4] sm:$0xf]
  %v34 = vld [vmem:[%s0 + $0x8] sm:$0xf]
  %v35 = vld [vmem:[%s0 + $0xc] sm:$0xf]
  %v36 = vld [vmem:[%s0 + $0x10] sm:$0xf]
  %v37 = vld [vmem:[%s0 + $0x14] sm:$0xf]
  %v38 = vld [vmem:[%s0 + $0x18] sm:$0xf]
  %v39 = vld [vmem:[%s0 + $0x1c] sm:$0xf]
  %v40 = vld [vmem:[%s1] sm:$0xff]
  %v41 = vld [vmem:[%s1 + $0x8] sm:$0xf]
  %v42 = vld [vmem:[%s1 + $0xc] sm:$0xff]
  %v43 = vld [vmem:[%s1 + $0x14] sm:$0xf]
  %v44 = vld [vmem:[%s1 + $0x18] sm:$0xff]
  %v45 = vld [vmem:[%s1 + $0x20] sm:$0xf]
  %v46 = vld [vmem:[%s1 + $0x24] sm:$0xff]
  %v47 = vld [vmem:[%s1 + $0x2c] sm:$0xf]
  %v48 = vld [vmem:[%s3] sm:$0x7]
  %v50 = vperm.slane %v48, 0
  %v51 = vperm.slane %v48, 1
  %v52 = vperm.slane %v48, 2
  %v64 = vunpack.c.l.b16 %v32
  %v65 = vunpack.c.l.b16 %v33
  %v66 = vunpack.c.l.b16 %v34
  %v67 = vunpack.c.l.b16 %v35
  %v68 = vunpack.c.l.b16 %v36
  %v69 = vunpack.c.l.b16 %v37
  %v70 = vunpack.c.l.b16 %v38
  %v71 = vunpack.c.l.b16 %v39
  %v72 = vpack.c.b16 %v65, %v64
  %v73 = vpack.c.b16 %v67, %v66
  %v74 = vpack.c.b16 %v69, %v68
  %v75 = vpack.c.b16 %v71, %v70
  %v84 = vunpack.c.l.b16 %v40
  %v85 = vunpack.c.h.b16 %v40
  %v86 = vunpack.c.l.b16 %v41
  %v87 = vunpack.c.l.b16 %v42
  %v88 = vunpack.c.h.b16 %v42
  %v89 = vunpack.c.l.b16 %v43
  %v90 = vunpack.c.l.b16 %v44
  %v91 = vunpack.c.h.b16 %v44
  %v92 = vunpack.c.l.b16 %v45
  %v93 = vunpack.c.l.b16 %v46
  %v94 = vunpack.c.h.b16 %v46
  %v95 = vunpack.c.l.b16 %v47
  %v96 = vpack.c.b16 %v87, %v84
  %v97 = vpack.c.b16 %v88, %v85
  %v98 = vpack.c.b16 %v89, %v86
  %v99 = vpack.c.b16 %v93, %v90
  %v100 = vpack.c.b16 %v94, %v91
  %v101 = vpack.c.b16 %v95, %v92
  %vm108 = vcmask 261120
  %v110 = vsel %vm108, %v72, 0
  %v113 = vsel %vm108, %v73, 0
  %v116 = vsel %vm108, %v74, 0
  %v119 = vsel %vm108, %v75, 0
  %121 = vmatpush.bf16.msra.mxu0 0
  %122 = vmatpush.bf16.msra.mxu0 0
  %123 = vmatpush.bf16.msra.mxu0 0
  %124 = vmatpush.bf16.msra.mxu0 0
  %125 = vmatpush.bf16.msra.mxu0 0
  %126 = vmatpush.bf16.msra.mxu0 0
  %127 = vmatpush.bf16.msra.mxu0 %v99
  %128 = vmatpush.bf16.msra.mxu0 %v96
  %129 = vmatmul.bf16.gmra.mxu0 %v110
  %v130 = vpop.f32.mrf.mxu0
  %v131 = vadd.f32 %v50, %v130
  %v132 = vpop.f32.mrf.mxu0
  %v133 = vadd.f32 %v50, %v132
  %134 = vmatmul.bf16.gmra.mxu0 %v113
  %v135 = vpop.f32.mrf.mxu0
  %v136 = vadd.f32 %v50, %v135
  %v137 = vpop.f32.mrf.mxu0
  %v138 = vadd.f32 %v50, %v137
  %139 = vmatmul.bf16.gmra.mxu0 %v116
  %v140 = vpop.f32.mrf.mxu0
  %v141 = vadd.f32 %v50, %v140
  %v142 = vpop.f32.mrf.mxu0
  %v143 = vadd.f32 %v50, %v142
  %144 = vmatmul.bf16.gmra.mxu0 %v119
  %v145 = vpop.f32.mrf.mxu0
  %v146 = vadd.f32 %v50, %v145
  %v147 = vpop.f32.mrf.mxu0
  %v148 = vadd.f32 %v50, %v147
  %149 = vdwg.mxu0
  %150 = vmatpush.bf16.msra.mxu0 0
  %151 = vmatpush.bf16.msra.mxu0 0
  %152 = vmatpush.bf16.msra.mxu0 0
  %153 = vmatpush.bf16.msra.mxu0 0
  %154 = vmatpush.bf16.msra.mxu0 0
  %155 = vmatpush.bf16.msra.mxu0 0
  %156 = vmatpush.bf16.msra.mxu0 %v100
  %157 = vmatpush.bf16.msra.mxu0 %v97
  %158 = vmatmul.bf16.gmra.mxu0 %v110
  %v159 = vpop.f32.mrf.mxu0
  %v160 = vadd.f32 %v51, %v159
  %v161 = vpop.f32.mrf.mxu0
  %v162 = vadd.f32 %v51, %v161
  %163 = vmatmul.bf16.gmra.mxu0 %v113
  %v164 = vpop.f32.mrf.mxu0
  %v165 = vadd.f32 %v51, %v164
  %v166 = vpop.f32.mrf.mxu0
  %v167 = vadd.f32 %v51, %v166
  %168 = vmatmul.bf16.gmra.mxu0 %v116
  %v169 = vpop.f32.mrf.mxu0
  %v170 = vadd.f32 %v51, %v169
  %v171 = vpop.f32.mrf.mxu0
  %v172 = vadd.f32 %v51, %v171
  %173 = vmatmul.bf16.gmra.mxu0 %v119
  %v174 = vpop.f32.mrf.mxu0
  %v175 = vadd.f32 %v51, %v174
  %v176 = vpop.f32.mrf.mxu0
  %v177 = vadd.f32 %v51, %v176
  %178 = vdwg.mxu0
  %179 = vmatpush.bf16.msra.mxu0 0
  %180 = vmatpush.bf16.msra.mxu0 0
  %181 = vmatpush.bf16.msra.mxu0 0
  %182 = vmatpush.bf16.msra.mxu0 0
  %183 = vmatpush.bf16.msra.mxu0 0
  %184 = vmatpush.bf16.msra.mxu0 0
  %185 = vmatpush.bf16.msra.mxu0 %v101
  %186 = vmatpush.bf16.msra.mxu0 %v98
  %187 = vmatmul.bf16.gmra.mxu0 %v110
  %v188 = vpop.f32.mrf.mxu0
  %v189 = vadd.f32 %v52, %v188
  %v190 = vpop.f32.mrf.mxu0
  %v191 = vadd.f32 %v52, %v190
  %192 = vmatmul.bf16.gmra.mxu0 %v113
  %v193 = vpop.f32.mrf.mxu0
  %v194 = vadd.f32 %v52, %v193
  %v195 = vpop.f32.mrf.mxu0
  %v196 = vadd.f32 %v52, %v195
  %197 = vmatmul.bf16.gmra.mxu0 %v116
  %v198 = vpop.f32.mrf.mxu0
  %v199 = vadd.f32 %v52, %v198
  %v200 = vpop.f32.mrf.mxu0
  %v201 = vadd.f32 %v52, %v200
  %202 = vmatmul.bf16.gmra.mxu0 %v119
  %v203 = vpop.f32.mrf.mxu0
  %v204 = vadd.f32 %v52, %v203
  %v205 = vpop.f32.mrf.mxu0
  %v206 = vadd.f32 %v52, %v205
  %207 = vdwg.mxu0
  %208 = vst [vmem:[#allocation2] sm:$0xff] %v131
  %209 = vst [vmem:[#allocation2 + $0x8] sm:$0xff] %v160
  %210 = vst [vmem:[#allocation2 + $0x10] sm:$0xff] %v189
  %211 = vst [vmem:[#allocation2 + $0x18] sm:$0xff] %v133
  %212 = vst [vmem:[#allocation2 + $0x20] sm:$0xff] %v162
  %213 = vst [vmem:[#allocation2 + $0x28] sm:$0xff] %v191
  %214 = vst [vmem:[#allocation2 + $0x30] sm:$0xff] %v136
  %215 = vst [vmem:[#allocation2 + $0x38] sm:$0xff] %v165
  %216 = vst [vmem:[#allocation2 + $0x40] sm:$0xff] %v194
  %217 = vst [vmem:[#allocation2 + $0x48] sm:$0xff] %v138
  %218 = vst [vmem:[#allocation2 + $0x50] sm:$0xff] %v167
  %219 = vst [vmem:[#allocation2 + $0x58] sm:$0xff] %v196
  %220 = vst [vmem:[#allocation2 + $0x60] sm:$0xff] %v141
  %221 = vst [vmem:[#allocation2 + $0x68] sm:$0xff] %v170
  %222 = vst [vmem:[#allocation2 + $0x70] sm:$0xff] %v199
  %223 = vst [vmem:[#allocation2 + $0x78] sm:$0xff] %v143
  %224 = vst [vmem:[#allocation2 + $0x80] sm:$0xff] %v172
  %225 = vst [vmem:[#allocation2 + $0x88] sm:$0xff] %v201
  %226 = vst [vmem:[#allocation2 + $0x90] sm:$0xff] %v146
  %227 = vst [vmem:[#allocation2 + $0x98] sm:$0xff] %v175
  %228 = vst [vmem:[#allocation2 + $0xa0] sm:$0xff] %v204
  %229 = vst [vmem:[#allocation2 + $0xa8] sm:$0xff] %v148
  %230 = vst [vmem:[#allocation2 + $0xb0] sm:$0xff] %v177
  %231 = vst [vmem:[#allocation2 + $0xb8] sm:$0xff] %v206
  %v232 = vld [vmem:[%s2] sm:$0xff]
  %v233 = vld [vmem:[%s2 + $0x8] sm:$0xf]
  %v234 = vld [vmem:[%s2 + $0xc] sm:$0xff]
  %v235 = vld [vmem:[%s2 + $0x14] sm:$0xf]
  %v236 = vld [vmem:[%s2 + $0x18] sm:$0xff]
  %v237 = vld [vmem:[%s2 + $0x20] sm:$0xf]
  %v238 = vld [vmem:[%s2 + $0x24] sm:$0xff]
  %v239 = vld [vmem:[%s2 + $0x2c] sm:$0xf]
  %v240 = vld [vmem:[%s2 + $0x30] sm:$0xff]
  %v241 = vld [vmem:[%s2 + $0x38] sm:$0xf]
  %v242 = vld [vmem:[%s2 + $0x3c] sm:$0xff]
  %v243 = vld [vmem:[%s2 + $0x44] sm:$0xf]
  %v244 = vld [vmem:[%s2 + $0x48] sm:$0xff]
  %v245 = vld [vmem:[%s2 + $0x50] sm:$0xf]
  %v246 = vld [vmem:[%s2 + $0x54] sm:$0xff]
  %v247 = vld [vmem:[%s2 + $0x5c] sm:$0xf]
  %v248 = vld [vmem:[%s2 + $0x60] sm:$0xff]
  %v249 = vld [vmem:[%s2 + $0x68] sm:$0xf]
  %v250 = vld [vmem:[%s2 + $0x6c] sm:$0xff]
  %v251 = vld [vmem:[%s2 + $0x74] sm:$0xf]
  %v252 = vld [vmem:[%s2 + $0x78] sm:$0xff]
  %v253 = vld [vmem:[%s2 + $0x80] sm:$0xf]
  %v254 = vld [vmem:[%s2 + $0x84] sm:$0xff]
  %v255 = vld [vmem:[%s2 + $0x8c] sm:$0xf]
  %v256 = vld [vmem:[%s2 + $0x90] sm:$0xff]
  %v257 = vld [vmem:[%s2 + $0x98] sm:$0xf]
  %v258 = vld [vmem:[%s2 + $0x9c] sm:$0xff]
  %v259 = vld [vmem:[%s2 + $0xa4] sm:$0xf]
  %v260 = vld [vmem:[%s2 + $0xa8] sm:$0xff]
  %v261 = vld [vmem:[%s2 + $0xb0] sm:$0xf]
  %v262 = vld [vmem:[%s2 + $0xb4] sm:$0xff]
  %v263 = vld [vmem:[%s2 + $0xbc] sm:$0xf]
  %v264 = vld [vmem:[%s4] sm:$0x1]
  %v266 = vperm.slane %v264, 0
  %v268 = vld [vmem:[#allocation3] sm:$0xff]
  %s269 = smul.u32 0, 3
  %s270 = smul.addr %s269, 8
  %s271 = scalar_lea.vmem [#allocation2], %s270
  %v272 = vld [vmem:[%s271] sm:$0xff]
  %v273 = vld [vmem:[%s271 + $0x8] sm:$0xff]
  %v274 = vld [vmem:[%s271 + $0x10] sm:$0xff]
  %v275 = vpack.c.bf16 %v268, %v268
  %v308 = vunpack.c.l.b16 %v232
  %v309 = vunpack.c.h.b16 %v232
  %v310 = vunpack.c.l.b16 %v233
  %v311 = vunpack.c.l.b16 %v234
  %v312 = vunpack.c.h.b16 %v234
  %v313 = vunpack.c.l.b16 %v235
  %v314 = vunpack.c.l.b16 %v236
  %v315 = vunpack.c.h.b16 %v236
  %v316 = vunpack.c.l.b16 %v237
  %v317 = vunpack.c.l.b16 %v238
  %v318 = vunpack.c.h.b16 %v238
  %v319 = vunpack.c.l.b16 %v239
  %v320 = vunpack.c.l.b16 %v240
  %v321 = vunpack.c.h.b16 %v240
  %v322 = vunpack.c.l.b16 %v241
  %v323 = vunpack.c.l.b16 %v242
  %v324 = vunpack.c.h.b16 %v242
  %v325 = vunpack.c.l.b16 %v243
  %v326 = vunpack.c.l.b16 %v244
  %v327 = vunpack.c.h.b16 %v244
  %v328 = vunpack.c.l.b16 %v245
  %v329 = vunpack.c.l.b16 %v246
  %v330 = vunpack.c.h.b16 %v246
  %v331 = vunpack.c.l.b16 %v247
  %v332 = vunpack.c.l.b16 %v248
  %v333 = vunpack.c.h.b16 %v248
  %v334 = vunpack.c.l.b16 %v249
  %v335 = vunpack.c.l.b16 %v250
  %v336 = vunpack.c.h.b16 %v250
  %v337 = vunpack.c.l.b16 %v251
  %v338 = vunpack.c.l.b16 %v252
  %v339 = vunpack.c.h.b16 %v252
  %v340 = vunpack.c.l.b16 %v253
  %v341 = vunpack.c.l.b16 %v254
  %v342 = vunpack.c.h.b16 %v254
  %v343 = vunpack.c.l.b16 %v255
  %v344 = vunpack.c.l.b16 %v256
  %v345 = vunpack.c.h.b16 %v256
  %v346 = vunpack.c.l.b16 %v257
  %v347 = vunpack.c.l.b16 %v258
  %v348 = vunpack.c.h.b16 %v258
  %v349 = vunpack.c.l.b16 %v259
  %v350 = vunpack.c.l.b16 %v260
  %v351 = vunpack.c.h.b16 %v260
  %v352 = vunpack.c.l.b16 %v261
  %v353 = vunpack.c.l.b16 %v262
  %v354 = vunpack.c.h.b16 %v262
  %v355 = vunpack.c.l.b16 %v263
  %v356 = vpack.c.b16 %v311, %v308
  %v357 = vpack.c.b16 %v312, %v309
  %v358 = vpack.c.b16 %v313, %v310
  %v359 = vpack.c.b16 %v317, %v314
  %v360 = vpack.c.b16 %v318, %v315
  %v361 = vpack.c.b16 %v319, %v316
  %v362 = vpack.c.b16 %v323, %v320
  %v363 = vpack.c.b16 %v324, %v321
  %v364 = vpack.c.b16 %v325, %v322
  %v365 = vpack.c.b16 %v329, %v326
  %v366 = vpack.c.b16 %v330, %v327
  %v367 = vpack.c.b16 %v331, %v328
  %v368 = vpack.c.b16 %v335, %v332
  %v369 = vpack.c.b16 %v336, %v333
  %v370 = vpack.c.b16 %v337, %v334
  %v371 = vpack.c.b16 %v341, %v338
  %v372 = vpack.c.b16 %v342, %v339
  %v373 = vpack.c.b16 %v343, %v340
  %v374 = vpack.c.b16 %v347, %v344
  %v375 = vpack.c.b16 %v348, %v345
  %v376 = vpack.c.b16 %v349, %v346
  %v377 = vpack.c.b16 %v353, %v350
  %v378 = vpack.c.b16 %v354, %v351
  %v379 = vpack.c.b16 %v355, %v352
  %404 = vmatpush.bf16.msra.mxu0 %v377
  %405 = vmatpush.bf16.msra.mxu0 %v374
  %406 = vmatpush.bf16.msra.mxu0 %v371
  %407 = vmatpush.bf16.msra.mxu0 %v368
  %408 = vmatpush.bf16.msra.mxu0 %v365
  %409 = vmatpush.bf16.msra.mxu0 %v362
  %410 = vmatpush.bf16.msra.mxu0 %v359
  %411 = vmatpush.bf16.msra.mxu0 %v356
  %412 = vmatmul.bf16.gmra.mxu0 %v275
  %v413 = vpop.f32.mrf.mxu0
  %v414 = vadd.f32 0.0, %v413
  %v415 = vpop.f32.mrf.mxu0
  %416 = vdwg.mxu0
  %417 = vmatpush.bf16.msra.mxu0 %v378
  %418 = vmatpush.bf16.msra.mxu0 %v375
  %419 = vmatpush.bf16.msra.mxu0 %v372
  %420 = vmatpush.bf16.msra.mxu0 %v369
  %421 = vmatpush.bf16.msra.mxu0 %v366
  %422 = vmatpush.bf16.msra.mxu0 %v363
  %423 = vmatpush.bf16.msra.mxu0 %v360
  %424 = vmatpush.bf16.msra.mxu0 %v357
  %425 = vmatmul.bf16.gmra.mxu0 %v275
  %v426 = vpop.f32.mrf.mxu0
  %v427 = vadd.f32 0.0, %v426
  %v428 = vpop.f32.mrf.mxu0
  %429 = vdwg.mxu0
  %430 = vmatpush.bf16.msra.mxu0 %v379
  %431 = vmatpush.bf16.msra.mxu0 %v376
  %432 = vmatpush.bf16.msra.mxu0 %v373
  %433 = vmatpush.bf16.msra.mxu0 %v370
  %434 = vmatpush.bf16.msra.mxu0 %v367
  %435 = vmatpush.bf16.msra.mxu0 %v364
  %436 = vmatpush.bf16.msra.mxu0 %v361
  %437 = vmatpush.bf16.msra.mxu0 %v358
  %438 = vmatmul.bf16.gmra.mxu0 %v275
  %v439 = vpop.f32.mrf.mxu0
  %v440 = vadd.f32 0.0, %v439
  %v441 = vpop.f32.mrf.mxu0
  %442 = vdwg.mxu0
  %v443 = vadd.f32 %v272, %v414
  %v444 = vxor.u32 %v443, 2147483648
  %v445 = vmul.f32 %v444, 1.442695
  %v446 = vpow.pop %v445
  %v447 = vadd.f32 %v446, 1.0
  %v448 = vrcp.pop %v447
  %v449 = vmul.f32 %v447, %v448
  %v450 = vsub.f32 1.0, %v449
  %v451 = vmul.f32 %v448, %v450
  %v452 = vadd.f32 %v448, %v451
  %vm453 = vweird.f32 %v447
  %vm454 = vweird.f32 %v448
  %vm455 = vmor %vm453, %vm454
  %v456 = vsel %vm455, %v448, %v452
  %v457 = vand.u32 2147483647, %v447
  %vm458 = vcmp.eq.f32.partialorder %v457, 8.507059e+37
  %v459 = vand.u32 %v447, 2147483648
  %v460 = vor.u32 1.1754944e-38, %v459
  %v461 = vsel %vm458, %v460, %v456
  %v462 = vmul.f32 1.0, %v461
  %v463 = vadd.f32 %v273, %v427
  %v464 = vxor.u32 %v463, 2147483648
  %v465 = vmul.f32 %v464, 1.442695
  %v466 = vpow.pop %v465
  %v467 = vadd.f32 %v466, 1.0
  %v468 = vrcp.pop %v467
  %v469 = vmul.f32 %v467, %v468
  %v470 = vsub.f32 1.0, %v469
  %v471 = vmul.f32 %v468, %v470
  %v472 = vadd.f32 %v468, %v471
  %vm473 = vweird.f32 %v467
  %vm474 = vweird.f32 %v468
  %vm475 = vmor %vm473, %vm474
  %v476 = vsel %vm475, %v468, %v472
  %v477 = vand.u32 2147483647, %v467
  %vm478 = vcmp.eq.f32.partialorder %v477, 8.507059e+37
  %v479 = vand.u32 %v467, 2147483648
  %v480 = vor.u32 1.1754944e-38, %v479
  %v481 = vsel %vm478, %v480, %v476
  %v482 = vmul.f32 1.0, %v481
  %v483 = vadd.f32 %v440, %v266
  %v484 = vmul.f32 %v462, %v483
  %v485 = vadd.f32 %v274, %v484
  %v486 = vtanh.pop %v485
  %v487 = vsub.f32 1.0, %v482
  %v488 = vmul.f32 %v487, %v486
  %v489 = vmul.f32 %v482, %v268
  %v490 = vadd.f32 %v488, %v489
  %491 = vst [vmem:[%s6] sm:$0xff] %v490
  %s492 = smul.u32 1, 3
  %s493 = smul.addr %s492, 8
  %s494 = scalar_lea.vmem [#allocation2], %s493
  %v495 = vld [vmem:[%s494] sm:$0xff]
  %v496 = vld [vmem:[%s494 + $0x8] sm:$0xff]
  %v497 = vld [vmem:[%s494 + $0x10] sm:$0xff]
  %v498 = vpack.c.bf16 %v490, %v490
  %499 = vmatpush.bf16.msra.mxu0 %v377
  %500 = vmatpush.bf16.msra.mxu0 %v374
  %501 = vmatpush.bf16.msra.mxu0 %v371
  %502 = vmatpush.bf16.msra.mxu0 %v368
  %503 = vmatpush.bf16.msra.mxu0 %v365
  %504 = vmatpush.bf16.msra.mxu0 %v362
  %505 = vmatpush.bf16.msra.mxu0 %v359
  %506 = vmatpush.bf16.msra.mxu0 %v356
  %507 = vmatmul.bf16.gmra.mxu0 %v498
  %v508 = vpop.f32.mrf.mxu0
  %v509 = vadd.f32 0.0, %v508
  %v510 = vpop.f32.mrf.mxu0
  %511 = vdwg.mxu0
  %512 = vmatpush.bf16.msra.mxu0 %v378
  %513 = vmatpush.bf16.msra.mxu0 %v375
  %514 = vmatpush.bf16.msra.mxu0 %v372
  %515 = vmatpush.bf16.msra.mxu0 %v369
  %516 = vmatpush.bf16.msra.mxu0 %v366
  %517 = vmatpush.bf16.msra.mxu0 %v363
  %518 = vmatpush.bf16.msra.mxu0 %v360
  %519 = vmatpush.bf16.msra.mxu0 %v357
  %520 = vmatmul.bf16.gmra.mxu0 %v498
  %v521 = vpop.f32.mrf.mxu0
  %v522 = vadd.f32 0.0, %v521
  %v523 = vpop.f32.mrf.mxu0
  %524 = vdwg.mxu0
  %525 = vmatpush.bf16.msra.mxu0 %v379
  %526 = vmatpush.bf16.msra.mxu0 %v376
  %527 = vmatpush.bf16.msra.mxu0 %v373
  %528 = vmatpush.bf16.msra.mxu0 %v370
  %529 = vmatpush.bf16.msra.mxu0 %v367
  %530 = vmatpush.bf16.msra.mxu0 %v364
  %531 = vmatpush.bf16.msra.mxu0 %v361
  %532 = vmatpush.bf16.msra.mxu0 %v358
  %533 = vmatmul.bf16.gmra.mxu0 %v498
  %v534 = vpop.f32.mrf.mxu0
  %v535 = vadd.f32 0.0, %v534
  %v536 = vpop.f32.mrf.mxu0
  %537 = vdwg.mxu0
  %v538 = vadd.f32 %v495, %v509
  %v539 = vxor.u32 %v538, 2147483648
  %v540 = vmul.f32 %v539, 1.442695
  %v541 = vpow.pop %v540
  %v542 = vadd.f32 %v541, 1.0
  %v543 = vrcp.pop %v542
  %v544 = vmul.f32 %v542, %v543
  %v545 = vsub.f32 1.0, %v544
  %v546 = vmul.f32 %v543, %v545
  %v547 = vadd.f32 %v543, %v546
  %vm548 = vweird.f32 %v542
  %vm549 = vweird.f32 %v543
  %vm550 = vmor %vm548, %vm549
  %v551 = vsel %vm550, %v543, %v547
  %v552 = vand.u32 2147483647, %v542
  %vm553 = vcmp.eq.f32.partialorder %v552, 8.507059e+37
  %v554 = vand.u32 %v542, 2147483648
  %v555 = vor.u32 1.1754944e-38, %v554
  %v556 = vsel %vm553, %v555, %v551
  %v557 = vmul.f32 1.0, %v556
  %v558 = vadd.f32 %v496, %v522
  %v559 = vxor.u32 %v558, 2147483648
  %v560 = vmul.f32 %v559, 1.442695
  %v561 = vpow.pop %v560
  %v562 = vadd.f32 %v561, 1.0
  %v563 = vrcp.pop %v562
  %v564 = vmul.f32 %v562, %v563
  %v565 = vsub.f32 1.0, %v564
  %v566 = vmul.f32 %v563, %v565
  %v567 = vadd.f32 %v563, %v566
  %vm568 = vweird.f32 %v562
  %vm569 = vweird.f32 %v563
  %vm570 = vmor %vm568, %vm569
  %v571 = vsel %vm570, %v563, %v567
  %v572 = vand.u32 2147483647, %v562
  %vm573 = vcmp.eq.f32.partialorder %v572, 8.507059e+37
  %v574 = vand.u32 %v562, 2147483648
  %v575 = vor.u32 1.1754944e-38, %v574
  %v576 = vsel %vm573, %v575, %v571
  %v577 = vmul.f32 1.0, %v576
  %v578 = vadd.f32 %v535, %v266
  %v579 = vmul.f32 %v557, %v578
  %v580 = vadd.f32 %v497, %v579
  %v581 = vtanh.pop %v580
  %v582 = vsub.f32 1.0, %v577
  %v583 = vmul.f32 %v582, %v581
  %v584 = vmul.f32 %v577, %v490
  %v585 = vadd.f32 %v583, %v584
  %s586 = scalar_lea.vmem %s6, 8
  %587 = vst [vmem:[%s586] sm:$0xff] %v585
  %s588 = smul.u32 2, 3
  %s589 = smul.addr %s588, 8
  %s590 = scalar_lea.vmem [#allocation2], %s589
  %v591 = vld [vmem:[%s590] sm:$0xff]
  %v592 = vld [vmem:[%s590 + $0x8] sm:$0xff]
  %v593 = vld [vmem:[%s590 + $0x10] sm:$0xff]
  %v594 = vpack.c.bf16 %v585, %v585
  %595 = vmatpush.bf16.msra.mxu0 %v377
  %596 = vmatpush.bf16.msra.mxu0 %v374
  %597 = vmatpush.bf16.msra.mxu0 %v371
  %598 = vmatpush.bf16.msra.mxu0 %v368
  %599 = vmatpush.bf16.msra.mxu0 %v365
  %600 = vmatpush.bf16.msra.mxu0 %v362
  %601 = vmatpush.bf16.msra.mxu0 %v359
  %602 = vmatpush.bf16.msra.mxu0 %v356
  %603 = vmatmul.bf16.gmra.mxu0 %v594
  %v604 = vpop.f32.mrf.mxu0
  %v605 = vadd.f32 0.0, %v604
  %v606 = vpop.f32.mrf.mxu0
  %607 = vdwg.mxu0
  %608 = vmatpush.bf16.msra.mxu0 %v378
  %609 = vmatpush.bf16.msra.mxu0 %v375
  %610 = vmatpush.bf16.msra.mxu0 %v372
  %611 = vmatpush.bf16.msra.mxu0 %v369
  %612 = vmatpush.bf16.msra.mxu0 %v366
  %613 = vmatpush.bf16.msra.mxu0 %v363
  %614 = vmatpush.bf16.msra.mxu0 %v360
  %615 = vmatpush.bf16.msra.mxu0 %v357
  %616 = vmatmul.bf16.gmra.mxu0 %v594
  %v617 = vpop.f32.mrf.mxu0
  %v618 = vadd.f32 0.0, %v617
  %v619 = vpop.f32.mrf.mxu0
  %620 = vdwg.mxu0
  %621 = vmatpush.bf16.msra.mxu0 %v379
  %622 = vmatpush.bf16.msra.mxu0 %v376
  %623 = vmatpush.bf16.msra.mxu0 %v373
  %624 = vmatpush.bf16.msra.mxu0 %v370
  %625 = vmatpush.bf16.msra.mxu0 %v367
  %626 = vmatpush.bf16.msra.mxu0 %v364
  %627 = vmatpush.bf16.msra.mxu0 %v361
  %628 = vmatpush.bf16.msra.mxu0 %v358
  %629 = vmatmul.bf16.gmra.mxu0 %v594
  %v630 = vpop.f32.mrf.mxu0
  %v631 = vadd.f32 0.0, %v630
  %v632 = vpop.f32.mrf.mxu0
  %633 = vdwg.mxu0
  %v634 = vadd.f32 %v591, %v605
  %v635 = vxor.u32 %v634, 2147483648
  %v636 = vmul.f32 %v635, 1.442695
  %v637 = vpow.pop %v636
  %v638 = vadd.f32 %v637, 1.0
  %v639 = vrcp.pop %v638
  %v640 = vmul.f32 %v638, %v639
  %v641 = vsub.f32 1.0, %v640
  %v642 = vmul.f32 %v639, %v641
  %v643 = vadd.f32 %v639, %v642
  %vm644 = vweird.f32 %v638
  %vm645 = vweird.f32 %v639
  %vm646 = vmor %vm644, %vm645
  %v647 = vsel %vm646, %v639, %v643
  %v648 = vand.u32 2147483647, %v638
  %vm649 = vcmp.eq.f32.partialorder %v648, 8.507059e+37
  %v650 = vand.u32 %v638, 2147483648
  %v651 = vor.u32 1.1754944e-38, %v650
  %v652 = vsel %vm649, %v651, %v647
  %v653 = vmul.f32 1.0, %v652
  %v654 = vadd.f32 %v592, %v618
  %v655 = vxor.u32 %v654, 2147483648
  %v656 = vmul.f32 %v655, 1.442695
  %v657 = vpow.pop %v656
  %v658 = vadd.f32 %v657, 1.0
  %v659 = vrcp.pop %v658
  %v660 = vmul.f32 %v658, %v659
  %v661 = vsub.f32 1.0, %v660
  %v662 = vmul.f32 %v659, %v661
  %v663 = vadd.f32 %v659, %v662
  %vm664 = vweird.f32 %v658
  %vm665 = vweird.f32 %v659
  %vm666 = vmor %vm664, %vm665
  %v667 = vsel %vm666, %v659, %v663
  %v668 = vand.u32 2147483647, %v658
  %vm669 = vcmp.eq.f32.partialorder %v668, 8.507059e+37
  %v670 = vand.u32 %v658, 2147483648
  %v671 = vor.u32 1.1754944e-38, %v670
  %v672 = vsel %vm669, %v671, %v667
  %v673 = vmul.f32 1.0, %v672
  %v674 = vadd.f32 %v631, %v266
  %v675 = vmul.f32 %v653, %v674
  %v676 = vadd.f32 %v593, %v675
  %v677 = vtanh.pop %v676
  %v678 = vsub.f32 1.0, %v673
  %v679 = vmul.f32 %v678, %v677
  %v680 = vmul.f32 %v673, %v585
  %v681 = vadd.f32 %v679, %v680
  %s682 = scalar_lea.vmem %s6, 16
  %683 = vst [vmem:[%s682] sm:$0xff] %v681
  %s684 = smul.u32 3, 3
  %s685 = smul.addr %s684, 8
  %s686 = scalar_lea.vmem [#allocation2], %s685
  %v687 = vld [vmem:[%s686] sm:$0xff]
  %v688 = vld [vmem:[%s686 + $0x8] sm:$0xff]
  %v689 = vld [vmem:[%s686 + $0x10] sm:$0xff]
  %v690 = vpack.c.bf16 %v681, %v681
  %691 = vmatpush.bf16.msra.mxu0 %v377
  %692 = vmatpush.bf16.msra.mxu0 %v374
  %693 = vmatpush.bf16.msra.mxu0 %v371
  %694 = vmatpush.bf16.msra.mxu0 %v368
  %695 = vmatpush.bf16.msra.mxu0 %v365
  %696 = vmatpush.bf16.msra.mxu0 %v362
  %697 = vmatpush.bf16.msra.mxu0 %v359
  %698 = vmatpush.bf16.msra.mxu0 %v356
  %699 = vmatmul.bf16.gmra.mxu0 %v690
  %v700 = vpop.f32.mrf.mxu0
  %v701 = vadd.f32 0.0, %v700
  %v702 = vpop.f32.mrf.mxu0
  %703 = vdwg.mxu0
  %704 = vmatpush.bf16.msra.mxu0 %v378
  %705 = vmatpush.bf16.msra.mxu0 %v375
  %706 = vmatpush.bf16.msra.mxu0 %v372
  %707 = vmatpush.bf16.msra.mxu0 %v369
  %708 = vmatpush.bf16.msra.mxu0 %v366
  %709 = vmatpush.bf16.msra.mxu0 %v363
  %710 = vmatpush.bf16.msra.mxu0 %v360
  %711 = vmatpush.bf16.msra.mxu0 %v357
  %712 = vmatmul.bf16.gmra.mxu0 %v690
  %v713 = vpop.f32.mrf.mxu0
  %v714 = vadd.f32 0.0, %v713
  %v715 = vpop.f32.mrf.mxu0
  %716 = vdwg.mxu0
  %717 = vmatpush.bf16.msra.mxu0 %v379
  %718 = vmatpush.bf16.msra.mxu0 %v376
  %719 = vmatpush.bf16.msra.mxu0 %v373
  %720 = vmatpush.bf16.msra.mxu0 %v370
  %721 = vmatpush.bf16.msra.mxu0 %v367
  %722 = vmatpush.bf16.msra.mxu0 %v364
  %723 = vmatpush.bf16.msra.mxu0 %v361
  %724 = vmatpush.bf16.msra.mxu0 %v358
  %725 = vmatmul.bf16.gmra.mxu0 %v690
  %v726 = vpop.f32.mrf.mxu0
  %v727 = vadd.f32 0.0, %v726
  %v728 = vpop.f32.mrf.mxu0
  %729 = vdwg.mxu0
  %v730 = vadd.f32 %v687, %v701
  %v731 = vxor.u32 %v730, 2147483648
  %v732 = vmul.f32 %v731, 1.442695
  %v733 = vpow.pop %v732
  %v734 = vadd.f32 %v733, 1.0
  %v735 = vrcp.pop %v734
  %v736 = vmul.f32 %v734, %v735
  %v737 = vsub.f32 1.0, %v736
  %v738 = vmul.f32 %v735, %v737
  %v739 = vadd.f32 %v735, %v738
  %vm740 = vweird.f32 %v734
  %vm741 = vweird.f32 %v735
  %vm742 = vmor %vm740, %vm741
  %v743 = vsel %vm742, %v735, %v739
  %v744 = vand.u32 2147483647, %v734
  %vm745 = vcmp.eq.f32.partialorder %v744, 8.507059e+37
  %v746 = vand.u32 %v734, 2147483648
  %v747 = vor.u32 1.1754944e-38, %v746
  %v748 = vsel %vm745, %v747, %v743
  %v749 = vmul.f32 1.0, %v748
  %v750 = vadd.f32 %v688, %v714
  %v751 = vxor.u32 %v750, 2147483648
  %v752 = vmul.f32 %v751, 1.442695
  %v753 = vpow.pop %v752
  %v754 = vadd.f32 %v753, 1.0
  %v755 = vrcp.pop %v754
  %v756 = vmul.f32 %v754, %v755
  %v757 = vsub.f32 1.0, %v756
  %v758 = vmul.f32 %v755, %v757
  %v759 = vadd.f32 %v755, %v758
  %vm760 = vweird.f32 %v754
  %vm761 = vweird.f32 %v755
  %vm762 = vmor %vm760, %vm761
  %v763 = vsel %vm762, %v755, %v759
  %v764 = vand.u32 2147483647, %v754
  %vm765 = vcmp.eq.f32.partialorder %v764, 8.507059e+37
  %v766 = vand.u32 %v754, 2147483648
  %v767 = vor.u32 1.1754944e-38, %v766
  %v768 = vsel %vm765, %v767, %v763
  %v769 = vmul.f32 1.0, %v768
  %v770 = vadd.f32 %v727, %v266
  %v771 = vmul.f32 %v749, %v770
  %v772 = vadd.f32 %v689, %v771
  %v773 = vtanh.pop %v772
  %v774 = vsub.f32 1.0, %v769
  %v775 = vmul.f32 %v774, %v773
  %v776 = vmul.f32 %v769, %v681
  %v777 = vadd.f32 %v775, %v776
  %s778 = scalar_lea.vmem %s6, 24
  %779 = vst [vmem:[%s778] sm:$0xff] %v777
  %s780 = smul.u32 4, 3
  %s781 = smul.addr %s780, 8
  %s782 = scalar_lea.vmem [#allocation2], %s781
  %v783 = vld [vmem:[%s782] sm:$0xff]
  %v784 = vld [vmem:[%s782 + $0x8] sm:$0xff]
  %v785 = vld [vmem:[%s782 + $0x10] sm:$0xff]
  %v786 = vpack.c.bf16 %v777, %v777
  %787 = vmatpush.bf16.msra.mxu0 %v377
  %788 = vmatpush.bf16.msra.mxu0 %v374
  %789 = vmatpush.bf16.msra.mxu0 %v371
  %790 = vmatpush.bf16.msra.mxu0 %v368
  %791 = vmatpush.bf16.msra.mxu0 %v365
  %792 = vmatpush.bf16.msra.mxu0 %v362
  %793 = vmatpush.bf16.msra.mxu0 %v359
  %794 = vmatpush.bf16.msra.mxu0 %v356
  %795 = vmatmul.bf16.gmra.mxu0 %v786
  %v796 = vpop.f32.mrf.mxu0
  %v797 = vadd.f32 0.0, %v796
  %v798 = vpop.f32.mrf.mxu0
  %799 = vdwg.mxu0
  %800 = vmatpush.bf16.msra.mxu0 %v378
  %801 = vmatpush.bf16.msra.mxu0 %v375
  %802 = vmatpush.bf16.msra.mxu0 %v372
  %803 = vmatpush.bf16.msra.mxu0 %v369
  %804 = vmatpush.bf16.msra.mxu0 %v366
  %805 = vmatpush.bf16.msra.mxu0 %v363
  %806 = vmatpush.bf16.msra.mxu0 %v360
  %807 = vmatpush.bf16.msra.mxu0 %v357
  %808 = vmatmul.bf16.gmra.mxu0 %v786
  %v809 = vpop.f32.mrf.mxu0
  %v810 = vadd.f32 0.0, %v809
  %v811 = vpop.f32.mrf.mxu0
  %812 = vdwg.mxu0
  %813 = vmatpush.bf16.msra.mxu0 %v379
  %814 = vmatpush.bf16.msra.mxu0 %v376
  %815 = vmatpush.bf16.msra.mxu0 %v373
  %816 = vmatpush.bf16.msra.mxu0 %v370
  %817 = vmatpush.bf16.msra.mxu0 %v367
  %818 = vmatpush.bf16.msra.mxu0 %v364
  %819 = vmatpush.bf16.msra.mxu0 %v361
  %820 = vmatpush.bf16.msra.mxu0 %v358
  %821 = vmatmul.bf16.gmra.mxu0 %v786
  %v822 = vpop.f32.mrf.mxu0
  %v823 = vadd.f32 0.0, %v822
  %v824 = vpop.f32.mrf.mxu0
  %825 = vdwg.mxu0
  %v826 = vadd.f32 %v783, %v797
  %v827 = vxor.u32 %v826, 2147483648
  %v828 = vmul.f32 %v827, 1.442695
  %v829 = vpow.pop %v828
  %v830 = vadd.f32 %v829, 1.0
  %v831 = vrcp.pop %v830
  %v832 = vmul.f32 %v830, %v831
  %v833 = vsub.f32 1.0, %v832
  %v834 = vmul.f32 %v831, %v833
  %v835 = vadd.f32 %v831, %v834
  %vm836 = vweird.f32 %v830
  %vm837 = vweird.f32 %v831
  %vm838 = vmor %vm836, %vm837
  %v839 = vsel %vm838, %v831, %v835
  %v840 = vand.u32 2147483647, %v830
  %vm841 = vcmp.eq.f32.partialorder %v840, 8.507059e+37
  %v842 = vand.u32 %v830, 2147483648
  %v843 = vor.u32 1.1754944e-38, %v842
  %v844 = vsel %vm841, %v843, %v839
  %v845 = vmul.f32 1.0, %v844
  %v846 = vadd.f32 %v784, %v810
  %v847 = vxor.u32 %v846, 2147483648
  %v848 = vmul.f32 %v847, 1.442695
  %v849 = vpow.pop %v848
  %v850 = vadd.f32 %v849, 1.0
  %v851 = vrcp.pop %v850
  %v852 = vmul.f32 %v850, %v851
  %v853 = vsub.f32 1.0, %v852
  %v854 = vmul.f32 %v851, %v853
  %v855 = vadd.f32 %v851, %v854
  %vm856 = vweird.f32 %v850
  %vm857 = vweird.f32 %v851
  %vm858 = vmor %vm856, %vm857
  %v859 = vsel %vm858, %v851, %v855
  %v860 = vand.u32 2147483647, %v850
  %vm861 = vcmp.eq.f32.partialorder %v860, 8.507059e+37
  %v862 = vand.u32 %v850, 2147483648
  %v863 = vor.u32 1.1754944e-38, %v862
  %v864 = vsel %vm861, %v863, %v859
  %v865 = vmul.f32 1.0, %v864
  %v866 = vadd.f32 %v823, %v266
  %v867 = vmul.f32 %v845, %v866
  %v868 = vadd.f32 %v785, %v867
  %v869 = vtanh.pop %v868
  %v870 = vsub.f32 1.0, %v865
  %v871 = vmul.f32 %v870, %v869
  %v872 = vmul.f32 %v865, %v777
  %v873 = vadd.f32 %v871, %v872
  %s874 = scalar_lea.vmem %s6, 32
  %875 = vst [vmem:[%s874] sm:$0xff] %v873
  %s876 = smul.u32 5, 3
  %s877 = smul.addr %s876, 8
  %s878 = scalar_lea.vmem [#allocation2], %s877
  %v879 = vld [vmem:[%s878] sm:$0xff]
  %v880 = vld [vmem:[%s878 + $0x8] sm:$0xff]
  %v881 = vld [vmem:[%s878 + $0x10] sm:$0xff]
  %v882 = vpack.c.bf16 %v873, %v873
  %883 = vmatpush.bf16.msra.mxu0 %v377
  %884 = vmatpush.bf16.msra.mxu0 %v374
  %885 = vmatpush.bf16.msra.mxu0 %v371
  %886 = vmatpush.bf16.msra.mxu0 %v368
  %887 = vmatpush.bf16.msra.mxu0 %v365
  %888 = vmatpush.bf16.msra.mxu0 %v362
  %889 = vmatpush.bf16.msra.mxu0 %v359
  %890 = vmatpush.bf16.msra.mxu0 %v356
  %891 = vmatmul.bf16.gmra.mxu0 %v882
  %v892 = vpop.f32.mrf.mxu0
  %v893 = vadd.f32 0.0, %v892
  %v894 = vpop.f32.mrf.mxu0
  %895 = vdwg.mxu0
  %896 = vmatpush.bf16.msra.mxu0 %v378
  %897 = vmatpush.bf16.msra.mxu0 %v375
  %898 = vmatpush.bf16.msra.mxu0 %v372
  %899 = vmatpush.bf16.msra.mxu0 %v369
  %900 = vmatpush.bf16.msra.mxu0 %v366
  %901 = vmatpush.bf16.msra.mxu0 %v363
  %902 = vmatpush.bf16.msra.mxu0 %v360
  %903 = vmatpush.bf16.msra.mxu0 %v357
  %904 = vmatmul.bf16.gmra.mxu0 %v882
  %v905 = vpop.f32.mrf.mxu0
  %v906 = vadd.f32 0.0, %v905
  %v907 = vpop.f32.mrf.mxu0
  %908 = vdwg.mxu0
  %909 = vmatpush.bf16.msra.mxu0 %v379
  %910 = vmatpush.bf16.msra.mxu0 %v376
  %911 = vmatpush.bf16.msra.mxu0 %v373
  %912 = vmatpush.bf16.msra.mxu0 %v370
  %913 = vmatpush.bf16.msra.mxu0 %v367
  %914 = vmatpush.bf16.msra.mxu0 %v364
  %915 = vmatpush.bf16.msra.mxu0 %v361
  %916 = vmatpush.bf16.msra.mxu0 %v358
  %917 = vmatmul.bf16.gmra.mxu0 %v882
  %v918 = vpop.f32.mrf.mxu0
  %v919 = vadd.f32 0.0, %v918
  %v920 = vpop.f32.mrf.mxu0
  %921 = vdwg.mxu0
  %v922 = vadd.f32 %v879, %v893
  %v923 = vxor.u32 %v922, 2147483648
  %v924 = vmul.f32 %v923, 1.442695
  %v925 = vpow.pop %v924
  %v926 = vadd.f32 %v925, 1.0
  %v927 = vrcp.pop %v926
  %v928 = vmul.f32 %v926, %v927
  %v929 = vsub.f32 1.0, %v928
  %v930 = vmul.f32 %v927, %v929
  %v931 = vadd.f32 %v927, %v930
  %vm932 = vweird.f32 %v926
  %vm933 = vweird.f32 %v927
  %vm934 = vmor %vm932, %vm933
  %v935 = vsel %vm934, %v927, %v931
  %v936 = vand.u32 2147483647, %v926
  %vm937 = vcmp.eq.f32.partialorder %v936, 8.507059e+37
  %v938 = vand.u32 %v926, 2147483648
  %v939 = vor.u32 1.1754944e-38, %v938
  %v940 = vsel %vm937, %v939, %v935
  %v941 = vmul.f32 1.0, %v940
  %v942 = vadd.f32 %v880, %v906
  %v943 = vxor.u32 %v942, 2147483648
  %v944 = vmul.f32 %v943, 1.442695
  %v945 = vpow.pop %v944
  %v946 = vadd.f32 %v945, 1.0
  %v947 = vrcp.pop %v946
  %v948 = vmul.f32 %v946, %v947
  %v949 = vsub.f32 1.0, %v948
  %v950 = vmul.f32 %v947, %v949
  %v951 = vadd.f32 %v947, %v950
  %vm952 = vweird.f32 %v946
  %vm953 = vweird.f32 %v947
  %vm954 = vmor %vm952, %vm953
  %v955 = vsel %vm954, %v947, %v951
  %v956 = vand.u32 2147483647, %v946
  %vm957 = vcmp.eq.f32.partialorder %v956, 8.507059e+37
  %v958 = vand.u32 %v946, 2147483648
  %v959 = vor.u32 1.1754944e-38, %v958
  %v960 = vsel %vm957, %v959, %v955
  %v961 = vmul.f32 1.0, %v960
  %v962 = vadd.f32 %v919, %v266
  %v963 = vmul.f32 %v941, %v962
  %v964 = vadd.f32 %v881, %v963
  %v965 = vtanh.pop %v964
  %v966 = vsub.f32 1.0, %v961
  %v967 = vmul.f32 %v966, %v965
  %v968 = vmul.f32 %v961, %v873
  %v969 = vadd.f32 %v967, %v968
  %s970 = scalar_lea.vmem %s6, 40
  %971 = vst [vmem:[%s970] sm:$0xff] %v969
  %s972 = smul.u32 6, 3
  %s973 = smul.addr %s972, 8
  %s974 = scalar_lea.vmem [#allocation2], %s973
  %v975 = vld [vmem:[%s974] sm:$0xff]
  %v976 = vld [vmem:[%s974 + $0x8] sm:$0xff]
  %v977 = vld [vmem:[%s974 + $0x10] sm:$0xff]
  %v978 = vpack.c.bf16 %v969, %v969
  %979 = vmatpush.bf16.msra.mxu0 %v377
  %980 = vmatpush.bf16.msra.mxu0 %v374
  %981 = vmatpush.bf16.msra.mxu0 %v371
  %982 = vmatpush.bf16.msra.mxu0 %v368
  %983 = vmatpush.bf16.msra.mxu0 %v365
  %984 = vmatpush.bf16.msra.mxu0 %v362
  %985 = vmatpush.bf16.msra.mxu0 %v359
  %986 = vmatpush.bf16.msra.mxu0 %v356
  %987 = vmatmul.bf16.gmra.mxu0 %v978
  %v988 = vpop.f32.mrf.mxu0
  %v989 = vadd.f32 0.0, %v988
  %v990 = vpop.f32.mrf.mxu0
  %991 = vdwg.mxu0
  %992 = vmatpush.bf16.msra.mxu0 %v378
  %993 = vmatpush.bf16.msra.mxu0 %v375
  %994 = vmatpush.bf16.msra.mxu0 %v372
  %995 = vmatpush.bf16.msra.mxu0 %v369
  %996 = vmatpush.bf16.msra.mxu0 %v366
  %997 = vmatpush.bf16.msra.mxu0 %v363
  %998 = vmatpush.bf16.msra.mxu0 %v360
  %999 = vmatpush.bf16.msra.mxu0 %v357
  %1000 = vmatmul.bf16.gmra.mxu0 %v978
  %v1001 = vpop.f32.mrf.mxu0
  %v1002 = vadd.f32 0.0, %v1001
  %v1003 = vpop.f32.mrf.mxu0
  %1004 = vdwg.mxu0
  %1005 = vmatpush.bf16.msra.mxu0 %v379
  %1006 = vmatpush.bf16.msra.mxu0 %v376
  %1007 = vmatpush.bf16.msra.mxu0 %v373
  %1008 = vmatpush.bf16.msra.mxu0 %v370
  %1009 = vmatpush.bf16.msra.mxu0 %v367
  %1010 = vmatpush.bf16.msra.mxu0 %v364
  %1011 = vmatpush.bf16.msra.mxu0 %v361
  %1012 = vmatpush.bf16.msra.mxu0 %v358
  %1013 = vmatmul.bf16.gmra.mxu0 %v978
  %v1014 = vpop.f32.mrf.mxu0
  %v1015 = vadd.f32 0.0, %v1014
  %v1016 = vpop.f32.mrf.mxu0
  %1017 = vdwg.mxu0
  %v1018 = vadd.f32 %v975, %v989
  %v1019 = vxor.u32 %v1018, 2147483648
  %v1020 = vmul.f32 %v1019, 1.442695
  %v1021 = vpow.pop %v1020
  %v1022 = vadd.f32 %v1021, 1.0
  %v1023 = vrcp.pop %v1022
  %v1024 = vmul.f32 %v1022, %v1023
  %v1025 = vsub.f32 1.0, %v1024
  %v1026 = vmul.f32 %v1023, %v1025
  %v1027 = vadd.f32 %v1023, %v1026
  %vm1028 = vweird.f32 %v1022
  %vm1029 = vweird.f32 %v1023
  %vm1030 = vmor %vm1028, %vm1029
  %v1031 = vsel %vm1030, %v1023, %v1027
  %v1032 = vand.u32 2147483647, %v1022
  %vm1033 = vcmp.eq.f32.partialorder %v1032, 8.507059e+37
  %v1034 = vand.u32 %v1022, 2147483648
  %v1035 = vor.u32 1.1754944e-38, %v1034
  %v1036 = vsel %vm1033, %v1035, %v1031
  %v1037 = vmul.f32 1.0, %v1036
  %v1038 = vadd.f32 %v976, %v1002
  %v1039 = vxor.u32 %v1038, 2147483648
  %v1040 = vmul.f32 %v1039, 1.442695
  %v1041 = vpow.pop %v1040
  %v1042 = vadd.f32 %v1041, 1.0
  %v1043 = vrcp.pop %v1042
  %v1044 = vmul.f32 %v1042, %v1043
  %v1045 = vsub.f32 1.0, %v1044
  %v1046 = vmul.f32 %v1043, %v1045
  %v1047 = vadd.f32 %v1043, %v1046
  %vm1048 = vweird.f32 %v1042
  %vm1049 = vweird.f32 %v1043
  %vm1050 = vmor %vm1048, %vm1049
  %v1051 = vsel %vm1050, %v1043, %v1047
  %v1052 = vand.u32 2147483647, %v1042
  %vm1053 = vcmp.eq.f32.partialorder %v1052, 8.507059e+37
  %v1054 = vand.u32 %v1042, 2147483648
  %v1055 = vor.u32 1.1754944e-38, %v1054
  %v1056 = vsel %vm1053, %v1055, %v1051
  %v1057 = vmul.f32 1.0, %v1056
  %v1058 = vadd.f32 %v1015, %v266
  %v1059 = vmul.f32 %v1037, %v1058
  %v1060 = vadd.f32 %v977, %v1059
  %v1061 = vtanh.pop %v1060
  %v1062 = vsub.f32 1.0, %v1057
  %v1063 = vmul.f32 %v1062, %v1061
  %v1064 = vmul.f32 %v1057, %v969
  %v1065 = vadd.f32 %v1063, %v1064
  %s1066 = scalar_lea.vmem %s6, 48
  %1067 = vst [vmem:[%s1066] sm:$0xff] %v1065
  %s1068 = smul.u32 7, 3
  %s1069 = smul.addr %s1068, 8
  %s1070 = scalar_lea.vmem [#allocation2], %s1069
  %v1071 = vld [vmem:[%s1070] sm:$0xff]
  %v1072 = vld [vmem:[%s1070 + $0x8] sm:$0xff]
  %v1073 = vld [vmem:[%s1070 + $0x10] sm:$0xff]
  %v1074 = vpack.c.bf16 %v1065, %v1065
  %1075 = vmatpush.bf16.msra.mxu0 %v377
  %1076 = vmatpush.bf16.msra.mxu0 %v374
  %1077 = vmatpush.bf16.msra.mxu0 %v371
  %1078 = vmatpush.bf16.msra.mxu0 %v368
  %1079 = vmatpush.bf16.msra.mxu0 %v365
  %1080 = vmatpush.bf16.msra.mxu0 %v362
  %1081 = vmatpush.bf16.msra.mxu0 %v359
  %1082 = vmatpush.bf16.msra.mxu0 %v356
  %1083 = vmatmul.bf16.gmra.mxu0 %v1074
  %v1084 = vpop.f32.mrf.mxu0
  %v1085 = vadd.f32 0.0, %v1084
  %v1086 = vpop.f32.mrf.mxu0
  %1087 = vdwg.mxu0
  %1088 = vmatpush.bf16.msra.mxu0 %v378
  %1089 = vmatpush.bf16.msra.mxu0 %v375
  %1090 = vmatpush.bf16.msra.mxu0 %v372
  %1091 = vmatpush.bf16.msra.mxu0 %v369
  %1092 = vmatpush.bf16.msra.mxu0 %v366
  %1093 = vmatpush.bf16.msra.mxu0 %v363
  %1094 = vmatpush.bf16.msra.mxu0 %v360
  %1095 = vmatpush.bf16.msra.mxu0 %v357
  %1096 = vmatmul.bf16.gmra.mxu0 %v1074
  %v1097 = vpop.f32.mrf.mxu0
  %v1098 = vadd.f32 0.0, %v1097
  %v1099 = vpop.f32.mrf.mxu0
  %1100 = vdwg.mxu0
  %1101 = vmatpush.bf16.msra.mxu0 %v379
  %1102 = vmatpush.bf16.msra.mxu0 %v376
  %1103 = vmatpush.bf16.msra.mxu0 %v373
  %1104 = vmatpush.bf16.msra.mxu0 %v370
  %1105 = vmatpush.bf16.msra.mxu0 %v367
  %1106 = vmatpush.bf16.msra.mxu0 %v364
  %1107 = vmatpush.bf16.msra.mxu0 %v361
  %1108 = vmatpush.bf16.msra.mxu0 %v358
  %1109 = vmatmul.bf16.gmra.mxu0 %v1074
  %v1110 = vpop.f32.mrf.mxu0
  %v1111 = vadd.f32 0.0, %v1110
  %v1112 = vpop.f32.mrf.mxu0
  %1113 = vdwg.mxu0
  %v1114 = vadd.f32 %v1071, %v1085
  %v1115 = vxor.u32 %v1114, 2147483648
  %v1116 = vmul.f32 %v1115, 1.442695
  %v1117 = vpow.pop %v1116
  %v1118 = vadd.f32 %v1117, 1.0
  %v1119 = vrcp.pop %v1118
  %v1120 = vmul.f32 %v1118, %v1119
  %v1121 = vsub.f32 1.0, %v1120
  %v1122 = vmul.f32 %v1119, %v1121
  %v1123 = vadd.f32 %v1119, %v1122
  %vm1124 = vweird.f32 %v1118
  %vm1125 = vweird.f32 %v1119
  %vm1126 = vmor %vm1124, %vm1125
  %v1127 = vsel %vm1126, %v1119, %v1123
  %v1128 = vand.u32 2147483647, %v1118
  %vm1129 = vcmp.eq.f32.partialorder %v1128, 8.507059e+37
  %v1130 = vand.u32 %v1118, 2147483648
  %v1131 = vor.u32 1.1754944e-38, %v1130
  %v1132 = vsel %vm1129, %v1131, %v1127
  %v1133 = vmul.f32 1.0, %v1132
  %v1134 = vadd.f32 %v1072, %v1098
  %v1135 = vxor.u32 %v1134, 2147483648
  %v1136 = vmul.f32 %v1135, 1.442695
  %v1137 = vpow.pop %v1136
  %v1138 = vadd.f32 %v1137, 1.0
  %v1139 = vrcp.pop %v1138
  %v1140 = vmul.f32 %v1138, %v1139
  %v1141 = vsub.f32 1.0, %v1140
  %v1142 = vmul.f32 %v1139, %v1141
  %v1143 = vadd.f32 %v1139, %v1142
  %vm1144 = vweird.f32 %v1138
  %vm1145 = vweird.f32 %v1139
  %vm1146 = vmor %vm1144, %vm1145
  %v1147 = vsel %vm1146, %v1139, %v1143
  %v1148 = vand.u32 2147483647, %v1138
  %vm1149 = vcmp.eq.f32.partialorder %v1148, 8.507059e+37
  %v1150 = vand.u32 %v1138, 2147483648
  %v1151 = vor.u32 1.1754944e-38, %v1150
  %v1152 = vsel %vm1149, %v1151, %v1147
  %v1153 = vmul.f32 1.0, %v1152
  %v1154 = vadd.f32 %v1111, %v266
  %v1155 = vmul.f32 %v1133, %v1154
  %v1156 = vadd.f32 %v1073, %v1155
  %v1157 = vtanh.pop %v1156
  %v1158 = vsub.f32 1.0, %v1153
  %v1159 = vmul.f32 %v1158, %v1157
  %v1160 = vmul.f32 %v1153, %v1065
  %v1161 = vadd.f32 %v1159, %v1160
  %s1162 = scalar_lea.vmem %s6, 56
  %1163 = vst [vmem:[%s1162] sm:$0xff] %v1161
  %1164 = vst [vmem:[#allocation3] sm:$0xff] %v1161
  %1165 = vst [vmem:[%s7] sm:$0xff] %v1161
  // Predicated region
  $region30: #{encoder_gru_forward.1} parent=0 // pred_check
    _
  $region31: #{encoder_gru_forward.1} parent=0 // pred_check_branch
    %1167 = sbr.rel (0) target = $region33
  $region32: #{encoder_gru_forward.1} parent=0 // pred_region
    _
  $region33: #{encoder_gru_forward.1} parent=0 // pred_fallthru
    _
  // Predicated region
  $region34: #{encoder_gru_forward.1} parent=0 // pred_check
    _
  $region35: #{encoder_gru_forward.1} parent=0 // pred_check_branch
    %1169 = sbr.rel (0) target = $region37
  $region36: #{encoder_gru_forward.1} parent=0 // pred_region
    _
  $region37: #{encoder_gru_forward.1} parent=0 // pred_fallthru
    _
  // Predicated region
  $region38: #{encoder_gru_forward.1} parent=0 // pred_check
    _
  $region39: #{encoder_gru_forward.1} parent=0 // pred_check_branch
    %1171 = sbr.rel (0) target = $region41
  $region40: #{encoder_gru_forward.1} parent=0 // pred_region
    _
  $region41: #{encoder_gru_forward.1} parent=0 // pred_fallthru
    _
  // Predicated region
  $region42: #{encoder_gru_forward.1} parent=0 // pred_check
    _
  $region43: #{encoder_gru_forward.1} parent=0 // pred_check_branch
    %1173 = sbr.rel (0) target = $region45
  $region44: #{encoder_gru_forward.1} parent=0 // pred_region
    _
  $region45: #{encoder_gru_forward.1} parent=0 // pred_fallthru
    _

</llo_original>
